<compile_context>
chip_gen: v5e
topology: v5e:2x2
jax: 0.10.0
libtpu: 0.0.40
codegen_flags: <defaults>
</compile_context>

<pallas_src>
import functools
import math

import jax
import jax.numpy as jnp
from jax.experimental import pallas as pl
from jax.experimental.pallas import tpu as pltpu

BN_EPS = 1e-5
LANE = 128


def _round_up(x, m):
    return ((x + m - 1) // m) * m


def _physical_vmem_bytes():
    try:
        return int(pltpu.get_tpu_info().vmem_capacity_bytes)
    except Exception:
        return 64 * 1024 * 1024   # assume the smallest per-core VMEM (v7x)


_PHYS_VMEM = _physical_vmem_bytes()
# <= ~3/4 of physical VMEM: ~48 MiB on v7x (64 MiB parts), ~96 MiB on v5e/v6e.
VMEM_LIMIT_BYTES = min((_PHYS_VMEM * 3) // 4, 100 * 1024 * 1024)
# budget for the double-buffered, M-tiled blocks of a single conv pass
TILE_VMEM_BUDGET = min(_PHYS_VMEM // 4, 24 * 1024 * 1024)


def _compiler_params(dims=("parallel",)):
    return pltpu.CompilerParams(
        dimension_semantics=dims,
        vmem_limit_bytes=VMEM_LIMIT_BYTES,
    )


# ---------------------------------------------------------------------------
# Pallas kernels
# ---------------------------------------------------------------------------
def conv_stats_kernel(p_ref, w_ref, stats_ref):
    """Pass 1 (recompute path): per-tile BN partial stats of y = patches @ W.

    Padded patch rows / K columns are zero and the conv bias is dropped, so
    padded rows contribute exactly 0 to sum / sum_sq -> no masking needed.
    """
    y = jnp.dot(p_ref[...], w_ref[...], preferred_element_type=jnp.float32)
    s = jnp.sum(y, axis=0, keepdims=True)
    ss = jnp.sum(y * y, axis=0, keepdims=True)
    stats_ref[...] = jnp.concatenate([s, ss], axis=1)[None]


def conv_apply_kernel(p_ref, w_ref, scale_ref, shift_ref, o_ref):
    """Pass 2 (recompute path): out = relu((patches @ W) * scale + shift), bf16."""
    y = jnp.dot(p_ref[...], w_ref[...], preferred_element_type=jnp.float32)
    o_ref[...] = jnp.maximum(y * scale_ref[...] + shift_ref[...], 0.0).astype(o_ref.dtype)


def conv_y_stats_kernel(p_ref, w_ref, y_ref, stats_ref):
    """Pass 1 (two-pass path): bf16 pre-BN y plus f32 per-tile BN partial stats."""
    y = jnp.dot(p_ref[...], w_ref[...], preferred_element_type=jnp.float32)
    y_ref[...] = y.astype(y_ref.dtype)
    s = jnp.sum(y, axis=0, keepdims=True)
    ss = jnp.sum(y * y, axis=0, keepdims=True)
    stats_ref[...] = jnp.concatenate([s, ss], axis=1)[None]


def bn_relu_kernel(y_ref, scale_ref, shift_ref, o_ref):
    """Pass 2 (two-pass path): out = relu(y * scale + shift), bf16 in / bf16 out."""
    y = y_ref[...].astype(jnp.float32)
    o_ref[...] = jnp.maximum(y * scale_ref[...] + shift_ref[...], 0.0).astype(o_ref.dtype)


def fc_fused_kernel(x_ref, w1_ref, b1_ref, w2_ref, b2_ref, w3_ref, b3_ref, o_ref):
    """relu(relu(relu(x@W1+b1)@W2+b2)@W3+b3); intermediates never leave VMEM/vregs."""
    h = jnp.dot(x_ref[...], w1_ref[...], preferred_element_type=jnp.float32) + b1_ref[...]
    h = jnp.maximum(h, 0.0)
    h = jnp.dot(h.astype(w2_ref.dtype), w2_ref[...],
                preferred_element_type=jnp.float32) + b2_ref[...]
    h = jnp.maximum(h, 0.0)
    h = jnp.dot(h.astype(w3_ref.dtype), w3_ref[...],
                preferred_element_type=jnp.float32) + b3_ref[...]
    o_ref[...] = jnp.maximum(h, 0.0)


def linear_relu_kernel(x_ref, w_ref, b_ref, o_ref, acc_ref):
    """K-tiled relu(x@W + b); fc fallback for weights too large to keep resident."""
    @pl.when(pl.program_id(2) == 0)
    def _():
        acc_ref[...] = jnp.zeros_like(acc_ref)

    acc_ref[...] += jnp.dot(x_ref[...], w_ref[...], preferred_element_type=jnp.float32)

    @pl.when(pl.program_id(2) == pl.num_programs(2) - 1)
    def _():
        o_ref[...] = jnp.maximum(acc_ref[...] + b_ref[...], 0.0).astype(o_ref.dtype)


# ---------------------------------------------------------------------------
# Tiling helpers
# ---------------------------------------------------------------------------
def _conv_tile_m(m_real, k_pad, c_pad, two_pass):
    """Largest M tile fitting the VMEM budget, with grid >= 2 whenever M splits."""
    m8 = _round_up(m_real, 8)
    w_bytes = 2 * k_pad * c_pad * 2                    # resident bf16 weight, 2 buffers
    vec_bytes = 4 * 2 * (2 * c_pad) * 4                # scale/shift/stats rows (generous)
    for tm in (4096, 2048, 1024, 512, 256, 128, 64, 32, 16, 8):
        if tm > m8:
            continue
        if 2 * tm > m8 and m8 > 8:
            continue                                   # keep >= 2 grid steps (v7x megacore)
        p_tile = 2 * tm * k_pad * 2                    # bf16 patch tile, 2 buffers
        o_tile = 2 * tm * c_pad * 2                    # bf16 y / out tile, 2 buffers
        if two_pass:
            pass1 = w_bytes + p_tile + o_tile + vec_bytes
            pass2 = 2 * o_tile + vec_bytes
        else:
            pass1 = w_bytes + p_tile + vec_bytes
            pass2 = w_bytes + p_tile + o_tile + vec_bytes
        if max(pass1, pass2) <= TILE_VMEM_BUDGET:
            return tm
    return 8


def _fc_batch_tile(n_pad):
    for cand in (512, 256, 128, 64, 32, 16, 8):
        if cand <= n_pad and n_pad % cand == 0 and (2 * cand <= n_pad or n_pad == 8):
            return cand
    return 8


# ---------------------------------------------------------------------------
# Conv + BatchNorm(train-mode) + ReLU
# ---------------------------------------------------------------------------
def conv_bn_relu(patches, w, gamma, beta):
    """Tiled conv-as-matmul + train-mode BatchNorm + ReLU.

    patches: (M, K_real) bf16 im2col rows (tap order kh, kw, cin);
    w: (K_pad, C_pad) bf16 zero-padded; gamma/beta: (1, C_pad) f32 (0 in padding).
    Returns (M_pad, C_pad) bf16; padded rows/channels are sliced off by caller.
    """
    m_real, k_real = patches.shape
    k_pad, c_pad = w.shape
    # Recompute path removes the M x C intermediate entirely; it wins on HBM
    # bytes whenever re-reading the patches is cheaper than a bf16 y round trip.
    two_pass = k_pad > 2 * c_pad
    tm = _conv_tile_m(m_real, k_pad, c_pad, two_pass)
    m_pad = _round_up(m_real, tm)
    patches = jnp.pad(patches, ((0, m_pad - m_real), (0, k_pad - k_real)))
    grid_n = m_pad // tm

    p_spec = pl.BlockSpec((tm, k_pad), lambda i: (i, 0))
    w_spec = pl.BlockSpec((k_pad, c_pad), lambda i: (0, 0))
    vec_spec = pl.BlockSpec((1, c_pad), lambda i: (0, 0))
    stats_spec = pl.BlockSpec((1, 1, 2 * c_pad), lambda i: (i, 0, 0))
    stats_sds = jax.ShapeDtypeStruct((grid_n, 1, 2 * c_pad), jnp.float32)
    act_spec = pl.BlockSpec((tm, c_pad), lambda i: (i, 0))
    act_sds = jax.ShapeDtypeStruct((m_pad, c_pad), jnp.bfloat16)

    if two_pass:
        y, stats = pl.pallas_call(
            conv_y_stats_kernel,
            grid=(grid_n,),
            in_specs=[p_spec, w_spec],
            out_specs=[act_spec, stats_spec],
            out_shape=[act_sds, stats_sds],
            compiler_params=_compiler_params(),
        )(patches, w)
    else:
        y = None
        stats = pl.pallas_call(
            conv_stats_kernel,
            grid=(grid_n,),
            in_specs=[p_spec, w_spec],
            out_specs=stats_spec,
            out_shape=stats_sds,
            compiler_params=_compiler_params(),
        )(patches, w)

    # Fold global batch statistics into per-channel scale/shift (tiny glue).
    total = jnp.sum(stats[:, 0, :], axis=0)                        # (2*C_pad,)
    mean = total[:c_pad] / m_real
    var = jnp.maximum(total[c_pad:] / m_real - mean * mean, 0.0)   # biased var (torch BN fwd)
    scale = (gamma[0] * jax.lax.rsqrt(var + BN_EPS)).reshape(1, c_pad)
    shift = (beta[0] - mean * scale[0]).reshape(1, c_pad)

    if two_pass:
        return pl.pallas_call(
            bn_relu_kernel,
            grid=(grid_n,),
            in_specs=[act_spec, vec_spec, vec_spec],
            out_specs=act_spec,
            out_shape=act_sds,
            compiler_params=_compiler_params(),
        )(y, scale, shift)

    return pl.pallas_call(
        conv_apply_kernel,
        grid=(grid_n,),
        in_specs=[p_spec, w_spec, vec_spec, vec_spec],
        out_specs=act_spec,
        out_shape=act_sds,
        compiler_params=_compiler_params(),
    )(patches, w, scale, shift)


# ---------------------------------------------------------------------------
# FC head
# ---------------------------------------------------------------------------
def linear_relu(x, w, b, out_dtype, *, tm):
    m, k = x.shape
    _, n = w.shape
    tn = 512 if n % 512 == 0 else (256 if n % 256 == 0 else 128)
    tk = 512 if k % 512 == 0 else (256 if k % 256 == 0 else 128)
    grid = (m // tm, n // tn, k // tk)
    return pl.pallas_call(
        linear_relu_kernel,
        grid=grid,
        in_specs=[
            pl.BlockSpec((tm, tk), lambda i, j, kk: (i, kk)),
            pl.BlockSpec((tk, tn), lambda i, j, kk: (kk, j)),
            pl.BlockSpec((1, tn), lambda i, j, kk: (0, j)),
        ],
        out_specs=pl.BlockSpec((tm, tn), lambda i, j, kk: (i, j)),
        out_shape=jax.ShapeDtypeStruct((m, n), out_dtype),
        scratch_shapes=[pltpu.VMEM((tm, tn), jnp.float32)],
        compiler_params=_compiler_params(("parallel", "parallel", "arbitrary")),
    )(x, w, b)


def fc_head(xf, params):
    w1, b1 = params["fc1"]["w"], params["fc1"]["b"]
    w2, b2 = params["fc2"]["w"], params["fc2"]["b"]
    w3, b3 = params["fc3"]["w"], params["fc3"]["b"]
    n_pad, flat_pad = xf.shape
    d1p, d2p, d3p = w1.shape[1], w2.shape[1], w3.shape[1]
    tb = _fc_batch_tile(n_pad)

    fused_bytes = (2 * 2 * (flat_pad * d1p + d1p * d2p + d2p * d3p)   # bf16 weights x2 buf
                   + 2 * tb * flat_pad * 2 + 2 * tb * d3p * 4         # x tile + out tile
                   + tb * (d1p + d2p) * 4)                            # live intermediates
    if fused_bytes <= max(TILE_VMEM_BUDGET, VMEM_LIMIT_BYTES // 2):
        return pl.pallas_call(
            fc_fused_kernel,
            grid=(n_pad // tb,),
            in_specs=[
                pl.BlockSpec((tb, flat_pad), lambda i: (i, 0)),
                pl.BlockSpec((flat_pad, d1p), lambda i: (0, 0)),
                pl.BlockSpec((1, d1p), lambda i: (0, 0)),
                pl.BlockSpec((d1p, d2p), lambda i: (0, 0)),
                pl.BlockSpec((1, d2p), lambda i: (0, 0)),
                pl.BlockSpec((d2p, d3p), lambda i: (0, 0)),
                pl.BlockSpec((1, d3p), lambda i: (0, 0)),
            ],
            out_specs=pl.BlockSpec((tb, d3p), lambda i: (i, 0)),
            out_shape=jax.ShapeDtypeStruct((n_pad, d3p), jnp.float32),
            compiler_params=_compiler_params(),
        )(xf, w1, b1, w2, b2, w3, b3)

    # Fused resident weights don't fit VMEM (large dim2/im_size, esp. v7x 64 MiB):
    # fall back to K-tiled matmul + bias + ReLU layers.
    h = linear_relu(xf, w1, b1, jnp.bfloat16, tm=tb)
    h = linear_relu(h, w2, b2, jnp.bfloat16, tm=tb)
    return linear_relu(h, w3, b3, jnp.float32, tm=tb)


# ---------------------------------------------------------------------------
# Glue: im2col patch extraction (layout work only; all matmuls run in kernels)
# ---------------------------------------------------------------------------
def extract_patches(x_nhwc, k=5, stride=2, pad=2):
    n, h, w, c = x_nhwc.shape
    h_out = (h + 2 * pad - k) // stride + 1
    w_out = (w + 2 * pad - k) // stride + 1
    xp = jnp.pad(x_nhwc, ((0, 0), (pad, pad), (pad, pad), (0, 0)))
    cols = []
    for kh in range(k):
        for kw in range(k):
            cols.append(
                xp[:, kh:kh + stride * h_out:stride, kw:kw + stride * w_out:stride, :])
    patches = jnp.concatenate(cols, axis=-1)   # (N, Hout, Wout, k*k*C), order (kh, kw, cin)
    return patches.reshape(n * h_out * w_out, k * k * c), h_out, w_out


# ---------------------------------------------------------------------------
# Encoder forward
# ---------------------------------------------------------------------------
def encoder_forward(params, x_nchw, *, dim1, dim_out):
    n = x_nchw.shape[0]
    couts = (dim1, dim1 * 2, dim1 * 4)
    x = jnp.transpose(x_nchw, (0, 2, 3, 1)).astype(jnp.bfloat16)   # NHWC, bf16

    h_out = w_out = None
    for i in range(3):
        layer = params["conv%d" % (i + 1)]
        patches, h_out, w_out = extract_patches(x)
        m = patches.shape[0]
        y = conv_bn_relu(patches, layer["w"], layer["gamma"], layer["beta"])
        x = y[:m, :couts[i]].reshape(n, h_out, w_out, couts[i])

    # Flatten in NHWC order; torch's NCHW x.view(N, -1) ordering was folded into
    # fc1's weight rows at init, so no activation transpose happens here.
    flat_real = couts[2] * h_out * w_out
    xf = x.reshape(n, flat_real)

    flat_pad = params["fc1"]["w"].shape[0]
    n_pad = _round_up(max(n, 16), 16)          # 16 rows = one packed bf16 sublane tile
    xf_p = jnp.zeros((n_pad, flat_pad), jnp.bfloat16).at[:n, :flat_real].set(xf)

    out = fc_head(xf_p, params)
    return out[:n, :dim_out]


# ---------------------------------------------------------------------------
# Deterministic parameter construction (shapes from Encoder.__init__)
# ---------------------------------------------------------------------------
def init_params(key, dim_in, dim1, dim2, dim_out, im_size):
    dim_hidden = [dim1, dim1 * 2, dim1 * 4, dim2, dim2]
    k = 5
    keys = jax.random.split(key, 12)
    ki = 0
    params = {}

    conv_dims = [(dim_in, dim_hidden[0]), (dim_hidden[0], dim_hidden[1]),
                 (dim_hidden[1], dim_hidden[2])]
    for i, (cin, cout) in enumerate(conv_dims):
        fan_in = cin * k * k
        bound = 1.0 / math.sqrt(fan_in)
        # PyTorch Conv2d weight layout (cout, cin, kh, kw), permuted to the
        # im2col row order (kh, kw, cin) used by extract_patches.
        w_t = jax.random.uniform(keys[ki], (cout, cin, k, k), jnp.float32, -bound, bound)
        ki += 1
        _unused_bias = jax.random.uniform(keys[ki], (cout,), jnp.float32, -bound, bound)
        ki += 1
        # Conv bias is dropped: train-mode BatchNorm subtracts the batch mean,
        # which cancels a per-channel bias exactly -> forward output unchanged.
        w = jnp.transpose(w_t, (2, 3, 1, 0)).reshape(k * k * cin, cout)
        k_pad = _round_up(k * k * cin, LANE)
        c_pad = _round_up(cout, LANE)
        # Lane-dense / 128-aligned, zero-padded bf16 weights. Padded channels keep
        # gamma=beta=0 so they stay exactly zero through BN + ReLU.
        w_p = jnp.zeros((k_pad, c_pad), jnp.bfloat16).at[:k * k * cin, :cout].set(
            w.astype(jnp.bfloat16))
        g_p = jnp.zeros((1, c_pad), jnp.float32).at[0, :cout].set(1.0)
        be_p = jnp.zeros((1, c_pad), jnp.float32)
        params["conv%d" % (i + 1)] = dict(w=w_p, gamma=g_p, beta=be_p)

    side = math.ceil(im_size / 8)
    c3 = dim_hidden[2]
    flat = c3 * side * side
    fc_dims = [(flat, dim_hidden[3]), (dim_hidden[3], dim_hidden[4]),
               (dim_hidden[4], dim_out)]
    for i, (din, dout) in enumerate(fc_dims):
        bound = 1.0 / math.sqrt(din)
        # PyTorch Linear weight layout (dout, din); the kernel uses (din, dout).
        w_t = jax.random.uniform(keys[ki], (dout, din), jnp.float32, -bound, bound)
        ki += 1
        b = jax.random.uniform(keys[ki], (dout,), jnp.float32, -bound, bound)
        ki += 1
        w = w_t.T
        if i == 0:
            # Fold torch's NCHW x.view(N, -1) flatten into fc1: our activation is
            # flattened in (h, w, c) order, torch's rows are in (c, h, w) order.
            idx = jnp.arange(flat)
            hh = idx // (side * c3)
            rem = idx % (side * c3)
            ww = rem // c3
            cc = rem % c3
            w = w[cc * (side * side) + hh * side + ww]
        din_pad = _round_up(din, LANE)
        dout_pad = _round_up(dout, LANE)
        w_p = jnp.zeros((din_pad, dout_pad), jnp.bfloat16).at[:din, :dout].set(
            w.astype(jnp.bfloat16))
        b_p = jnp.zeros((1, dout_pad), jnp.float32).at[0, :dout].set(b)
        params["fc%d" % (i + 1)] = dict(w=w_p, b=b_p)

    return params


if __name__ == "__main__":
    # Small shapes consistent with the module's forward:
    # batch=2, dim_in=4, im_size=16, dim1=8, dim2=32, dim_out=16
    N, DIM_IN, IM_SIZE = 2, 4, 16
    DIM1, DIM2, DIM_OUT = 8, 32, 16

    key = jax.random.PRNGKey(0)
    k_x, k_p = jax.random.split(key)
    x = jax.random.normal(k_x, (N, DIM_IN, IM_SIZE, IM_SIZE), jnp.float32)
    params = init_params(k_p, DIM_IN, DIM1, DIM2, DIM_OUT, IM_SIZE)

    fwd = jax.jit(functools.partial(encoder_forward, dim1=DIM1, dim_out=DIM_OUT))
    out = jax.block_until_ready(fwd(params, x))

    expected_shape = (N, DIM_OUT)
    assert out.shape == expected_shape, (out.shape, expected_shape)
    assert bool(jnp.all(jnp.isfinite(out)))
    print("KERNEL_OK")
</pallas_src>

<mosaic_0001>
module attributes {stable_mosaic.version = 11 : i64} {
  func.func @conv_stats_kernel(%arg0: i32, %arg1: memref<64x128xbf16, #tpu.memory_space<vmem>>, %arg2: memref<128x128xbf16, #tpu.memory_space<vmem>>, %arg3: memref<1x1x256xf32, #tpu.memory_space<vmem>>) attributes {dimension_semantics = [#tpu.dimension_semantics<parallel>], iteration_bounds = array<i64: 2>, scalar_prefetch = 0 : i64, scratch_operands = 0 : i64, tpu.core_type = #tpu.core_type<tc>, window_params = [{transform_indices = @transform_0, window_bounds = array<i64: 64, 128>}, {pipeline_mode = #tpu.pipeline_mode<synchronous>, transform_indices = @transform_1, window_bounds = array<i64: 128, 128>}, {transform_indices = @transform_2, window_bounds = array<i64: 1, 1, 256>}]} {
    %c0 = arith.constant 0 : index
    %c0_0 = arith.constant 0 : index
    %0 = vector.load %arg1[%c0, %c0_0] : memref<64x128xbf16, #tpu.memory_space<vmem>>, vector<64x128xbf16>
    %c0_1 = arith.constant 0 : index
    %c0_2 = arith.constant 0 : index
    %1 = vector.load %arg2[%c0_1, %c0_2] : memref<128x128xbf16, #tpu.memory_space<vmem>>, vector<128x128xbf16>
    %cst = arith.constant dense<0.000000e+00> : vector<64x128xf32>
    %2 = tpu.matmul %0, %1, %cst {dimension_numbers = #tpu.dot_dimension_numbers<[1], [0], [0], [1], [0, 0, 1, 1], [], []>} : vector<64x128xbf16>, vector<128x128xbf16>, vector<64x128xf32> -> vector<64x128xf32>
    %cst_3 = arith.constant dense<0.000000e+00> : vector<128xf32>
    %3 = vector.multi_reduction <add>, %2, %cst_3 [0] : vector<64x128xf32> to vector<128xf32>
    %4 = vector.shape_cast %3 : vector<128xf32> to vector<1x128xf32>
    %5 = arith.mulf %2, %2 : vector<64x128xf32>
    %cst_4 = arith.constant dense<0.000000e+00> : vector<128xf32>
    %6 = vector.multi_reduction <add>, %5, %cst_4 [0] : vector<64x128xf32> to vector<128xf32>
    %7 = vector.shape_cast %6 : vector<128xf32> to vector<1x128xf32>
    %8 = tpu.concatenate %4, %7 in 1 : vector<1x128xf32>, vector<1x128xf32> -> vector<1x256xf32>
    %9 = vector.shape_cast %8 : vector<1x256xf32> to vector<1x1x256xf32>
    %c0_5 = arith.constant 0 : index
    %c0_6 = arith.constant 0 : index
    %c0_7 = arith.constant 0 : index
    %10 = vector.load %arg3[%c0_5, %c0_6, %c0_7] : memref<1x1x256xf32, #tpu.memory_space<vmem>>, vector<1x1x256xf32>
    tpu.vector_store %arg3[%c0_5, %c0_6, %c0_7], %9 {strides = array<i32>} : memref<1x1x256xf32, #tpu.memory_space<vmem>>, vector<1x1x256xf32>,
    return
  }
  func.func @transform_0(%arg0: i32) -> (i32, i32) {
    %c0_i32 = arith.constant 0 : i32
    %c0_i32_0 = arith.constant 0 : i32
    return %arg0, %c0_i32 : i32, i32
  }
  func.func @transform_1(%arg0: i32) -> (i32, i32) {
    %c0_i32 = arith.constant 0 : i32
    %c0_i32_0 = arith.constant 0 : i32
    %c0_i32_1 = arith.constant 0 : i32
    return %c0_i32, %c0_i32_0 : i32, i32
  }
  func.func @transform_2(%arg0: i32) -> (i32, i32, i32) {
    %c0_i32 = arith.constant 0 : i32
    %c0_i32_0 = arith.constant 0 : i32
    %c0_i32_1 = arith.constant 0 : i32
    return %arg0, %c0_i32, %c0_i32_0 : i32, i32, i32
  }
}

module attributes {stable_mosaic.version = 11 : i64} {
  func.func @conv_apply_kernel(%arg0: i32, %arg1: memref<64x128xbf16, #tpu.memory_space<vmem>>, %arg2: memref<128x128xbf16, #tpu.memory_space<vmem>>, %arg3: memref<1x128xf32, #tpu.memory_space<vmem>>, %arg4: memref<1x128xf32, #tpu.memory_space<vmem>>, %arg5: memref<64x128xbf16, #tpu.memory_space<vmem>>) attributes {dimension_semantics = [#tpu.dimension_semantics<parallel>], iteration_bounds = array<i64: 2>, scalar_prefetch = 0 : i64, scratch_operands = 0 : i64, tpu.core_type = #tpu.core_type<tc>, window_params = [{transform_indices = @transform_0, window_bounds = array<i64: 64, 128>}, {pipeline_mode = #tpu.pipeline_mode<synchronous>, transform_indices = @transform_1, window_bounds = array<i64: 128, 128>}, {pipeline_mode = #tpu.pipeline_mode<synchronous>, transform_indices = @transform_2, window_bounds = array<i64: 1, 128>}, {pipeline_mode = #tpu.pipeline_mode<synchronous>, transform_indices = @transform_3, window_bounds = array<i64: 1, 128>}, {transform_indices = @transform_4, window_bounds = array<i64: 64, 128>}]} {
    %c0 = arith.constant 0 : index
    %c0_0 = arith.constant 0 : index
    %0 = vector.load %arg1[%c0, %c0_0] : memref<64x128xbf16, #tpu.memory_space<vmem>>, vector<64x128xbf16>
    %c0_1 = arith.constant 0 : index
    %c0_2 = arith.constant 0 : index
    %1 = vector.load %arg2[%c0_1, %c0_2] : memref<128x128xbf16, #tpu.memory_space<vmem>>, vector<128x128xbf16>
    %cst = arith.constant dense<0.000000e+00> : vector<64x128xf32>
    %2 = tpu.matmul %0, %1, %cst {dimension_numbers = #tpu.dot_dimension_numbers<[1], [0], [0], [1], [0, 0, 1, 1], [], []>} : vector<64x128xbf16>, vector<128x128xbf16>, vector<64x128xf32> -> vector<64x128xf32>
    %c0_3 = arith.constant 0 : index
    %c0_4 = arith.constant 0 : index
    %3 = vector.load %arg3[%c0_3, %c0_4] : memref<1x128xf32, #tpu.memory_space<vmem>>, vector<1x128xf32>
    %4 = vector.broadcast %3 : vector<1x128xf32> to vector<64x128xf32>
    %5 = arith.mulf %2, %4 : vector<64x128xf32>
    %c0_5 = arith.constant 0 : index
    %c0_6 = arith.constant 0 : index
    %6 = vector.load %arg4[%c0_5, %c0_6] : memref<1x128xf32, #tpu.memory_space<vmem>>, vector<1x128xf32>
    %7 = vector.broadcast %6 : vector<1x128xf32> to vector<64x128xf32>
    %8 = arith.addf %5, %7 : vector<64x128xf32>
    %cst_7 = arith.constant 0.000000e+00 : f32
    %9 = vector.broadcast %cst_7 : f32 to vector<64x128xf32>
    %10 = arith.maximumf %8, %9 : vector<64x128xf32>
    %11 = arith.truncf %10 : vector<64x128xf32> to vector<64x128xbf16>
    %c0_8 = arith.constant 0 : index
    %c0_9 = arith.constant 0 : index
    %12 = vector.load %arg5[%c0_8, %c0_9] : memref<64x128xbf16, #tpu.memory_space<vmem>>, vector<64x128xbf16>
    tpu.vector_store %arg5[%c0_8, %c0_9], %11 {strides = array<i32>} : memref<64x128xbf16, #tpu.memory_space<vmem>>, vector<64x128xbf16>,
    return
  }
  func.func @transform_0(%arg0: i32) -> (i32, i32) {
    %c0_i32 = arith.constant 0 : i32
    %c0_i32_0 = arith.constant 0 : i32
    return %arg0, %c0_i32 : i32, i32
  }
  func.func @transform_1(%arg0: i32) -> (i32, i32) {
    %c0_i32 = arith.constant 0 : i32
    %c0_i32_0 = arith.constant 0 : i32
    %c0_i32_1 = arith.constant 0 : i32
    return %c0_i32, %c0_i32_0 : i32, i32
  }
  func.func @transform_2(%arg0: i32) -> (i32, i32) {
    %c0_i32 = arith.constant 0 : i32
    %c0_i32_0 = arith.constant 0 : i32
    %c0_i32_1 = arith.constant 0 : i32
    return %c0_i32, %c0_i32_0 : i32, i32
  }
  func.func @transform_3(%arg0: i32) -> (i32, i32) {
    %c0_i32 = arith.constant 0 : i32
    %c0_i32_0 = arith.constant 0 : i32
    %c0_i32_1 = arith.constant 0 : i32
    return %c0_i32, %c0_i32_0 : i32, i32
  }
  func.func @transform_4(%arg0: i32) -> (i32, i32) {
    %c0_i32 = arith.constant 0 : i32
    %c0_i32_0 = arith.constant 0 : i32
    return %arg0, %c0_i32 : i32, i32
  }
}

module attributes {stable_mosaic.version = 11 : i64} {
  func.func @conv_apply_kernel(%arg0: i32, %arg1: memref<16x256xbf16, #tpu.memory_space<vmem>>, %arg2: memref<256x128xbf16, #tpu.memory_space<vmem>>, %arg3: memref<1x128xf32, #tpu.memory_space<vmem>>, %arg4: memref<1x128xf32, #tpu.memory_space<vmem>>, %arg5: memref<16x128xbf16, #tpu.memory_space<vmem>>) attributes {dimension_semantics = [#tpu.dimension_semantics<parallel>], iteration_bounds = array<i64: 2>, scalar_prefetch = 0 : i64, scratch_operands = 0 : i64, tpu.core_type = #tpu.core_type<tc>, window_params = [{transform_indices = @transform_0, window_bounds = array<i64: 16, 256>}, {pipeline_mode = #tpu.pipeline_mode<synchronous>, transform_indices = @transform_1, window_bounds = array<i64: 256, 128>}, {pipeline_mode = #tpu.pipeline_mode<synchronous>, transform_indices = @transform_2, window_bounds = array<i64: 1, 128>}, {pipeline_mode = #tpu.pipeline_mode<synchronous>, transform_indices = @transform_3, window_bounds = array<i64: 1, 128>}, {transform_indices = @transform_4, window_bounds = array<i64: 16, 128>}]} {
    %c0 = arith.constant 0 : index
    %c0_0 = arith.constant 0 : index
    %0 = vector.load %arg1[%c0, %c0_0] : memref<16x256xbf16, #tpu.memory_space<vmem>>, vector<16x256xbf16>
    %c0_1 = arith.constant 0 : index
    %c0_2 = arith.constant 0 : index
    %1 = vector.load %arg2[%c0_1, %c0_2] : memref<256x128xbf16, #tpu.memory_space<vmem>>, vector<256x128xbf16>
    %cst = arith.constant dense<0.000000e+00> : vector<16x128xf32>
    %2 = tpu.matmul %0, %1, %cst {dimension_numbers = #tpu.dot_dimension_numbers<[1], [0], [0], [1], [0, 0, 1, 1], [], []>} : vector<16x256xbf16>, vector<256x128xbf16>, vector<16x128xf32> -> vector<16x128xf32>
    %c0_3 = arith.constant 0 : index
    %c0_4 = arith.constant 0 : index
    %3 = vector.load %arg3[%c0_3, %c0_4] : memref<1x128xf32, #tpu.memory_space<vmem>>, vector<1x128xf32>
    %4 = vector.broadcast %3 : vector<1x128xf32> to vector<16x128xf32>
    %5 = arith.mulf %2, %4 : vector<16x128xf32>
    %c0_5 = arith.constant 0 : index
    %c0_6 = arith.constant 0 : index
    %6 = vector.load %arg4[%c0_5, %c0_6] : memref<1x128xf32, #tpu.memory_space<vmem>>, vector<1x128xf32>
    %7 = vector.broadcast %6 : vector<1x128xf32> to vector<16x128xf32>
    %8 = arith.addf %5, %7 : vector<16x128xf32>
    %cst_7 = arith.constant 0.000000e+00 : f32
    %9 = vector.broadcast %cst_7 : f32 to vector<16x128xf32>
    %10 = arith.maximumf %8, %9 : vector<16x128xf32>
    %11 = arith.truncf %10 : vector<16x128xf32> to vector<16x128xbf16>
    %c0_8 = arith.constant 0 : index
    %c0_9 = arith.constant 0 : index
    %12 = vector.load %arg5[%c0_8, %c0_9] : memref<16x128xbf16, #tpu.memory_space<vmem>>, vector<16x128xbf16>
    tpu.vector_store %arg5[%c0_8, %c0_9], %11 {strides = array<i32>} : memref<16x128xbf16, #tpu.memory_space<vmem>>, vector<16x128xbf16>,
    return
  }
  func.func @transform_0(%arg0: i32) -> (i32, i32) {
    %c0_i32 = arith.constant 0 : i32
    %c0_i32_0 = arith.constant 0 : i32
    return %arg0, %c0_i32 : i32, i32
  }
  func.func @transform_1(%arg0: i32) -> (i32, i32) {
    %c0_i32 = arith.constant 0 : i32
    %c0_i32_0 = arith.constant 0 : i32
    %c0_i32_1 = arith.constant 0 : i32
    return %c0_i32, %c0_i32_0 : i32, i32
  }
  func.func @transform_2(%arg0: i32) -> (i32, i32) {
    %c0_i32 = arith.constant 0 : i32
    %c0_i32_0 = arith.constant 0 : i32
    %c0_i32_1 = arith.constant 0 : i32
    return %c0_i32, %c0_i32_0 : i32, i32
  }
  func.func @transform_3(%arg0: i32) -> (i32, i32) {
    %c0_i32 = arith.constant 0 : i32
    %c0_i32_0 = arith.constant 0 : i32
    %c0_i32_1 = arith.constant 0 : i32
    return %c0_i32, %c0_i32_0 : i32, i32
  }
  func.func @transform_4(%arg0: i32) -> (i32, i32) {
    %c0_i32 = arith.constant 0 : i32
    %c0_i32_0 = arith.constant 0 : i32
    return %arg0, %c0_i32 : i32, i32
  }
}

module attributes {stable_mosaic.version = 11 : i64} {
  func.func @conv_stats_kernel(%arg0: i32, %arg1: memref<16x256xbf16, #tpu.memory_space<vmem>>, %arg2: memref<256x128xbf16, #tpu.memory_space<vmem>>, %arg3: memref<1x1x256xf32, #tpu.memory_space<vmem>>) attributes {dimension_semantics = [#tpu.dimension_semantics<parallel>], iteration_bounds = array<i64: 2>, scalar_prefetch = 0 : i64, scratch_operands = 0 : i64, tpu.core_type = #tpu.core_type<tc>, window_params = [{transform_indices = @transform_0, window_bounds = array<i64: 16, 256>}, {pipeline_mode = #tpu.pipeline_mode<synchronous>, transform_indices = @transform_1, window_bounds = array<i64: 256, 128>}, {transform_indices = @transform_2, window_bounds = array<i64: 1, 1, 256>}]} {
    %c0 = arith.constant 0 : index
    %c0_0 = arith.constant 0 : index
    %0 = vector.load %arg1[%c0, %c0_0] : memref<16x256xbf16, #tpu.memory_space<vmem>>, vector<16x256xbf16>
    %c0_1 = arith.constant 0 : index
    %c0_2 = arith.constant 0 : index
    %1 = vector.load %arg2[%c0_1, %c0_2] : memref<256x128xbf16, #tpu.memory_space<vmem>>, vector<256x128xbf16>
    %cst = arith.constant dense<0.000000e+00> : vector<16x128xf32>
    %2 = tpu.matmul %0, %1, %cst {dimension_numbers = #tpu.dot_dimension_numbers<[1], [0], [0], [1], [0, 0, 1, 1], [], []>} : vector<16x256xbf16>, vector<256x128xbf16>, vector<16x128xf32> -> vector<16x128xf32>
    %cst_3 = arith.constant dense<0.000000e+00> : vector<128xf32>
    %3 = vector.multi_reduction <add>, %2, %cst_3 [0] : vector<16x128xf32> to vector<128xf32>
    %4 = vector.shape_cast %3 : vector<128xf32> to vector<1x128xf32>
    %5 = arith.mulf %2, %2 : vector<16x128xf32>
    %cst_4 = arith.constant dense<0.000000e+00> : vector<128xf32>
    %6 = vector.multi_reduction <add>, %5, %cst_4 [0] : vector<16x128xf32> to vector<128xf32>
    %7 = vector.shape_cast %6 : vector<128xf32> to vector<1x128xf32>
    %8 = tpu.concatenate %4, %7 in 1 : vector<1x128xf32>, vector<1x128xf32> -> vector<1x256xf32>
    %9 = vector.shape_cast %8 : vector<1x256xf32> to vector<1x1x256xf32>
    %c0_5 = arith.constant 0 : index
    %c0_6 = arith.constant 0 : index
    %c0_7 = arith.constant 0 : index
    %10 = vector.load %arg3[%c0_5, %c0_6, %c0_7] : memref<1x1x256xf32, #tpu.memory_space<vmem>>, vector<1x1x256xf32>
    tpu.vector_store %arg3[%c0_5, %c0_6, %c0_7], %9 {strides = array<i32>} : memref<1x1x256xf32, #tpu.memory_space<vmem>>, vector<1x1x256xf32>,
    return
  }
  func.func @transform_0(%arg0: i32) -> (i32, i32) {
    %c0_i32 = arith.constant 0 : i32
    %c0_i32_0 = arith.constant 0 : i32
    return %arg0, %c0_i32 : i32, i32
  }
  func.func @transform_1(%arg0: i32) -> (i32, i32) {
    %c0_i32 = arith.constant 0 : i32
    %c0_i32_0 = arith.constant 0 : i32
    %c0_i32_1 = arith.constant 0 : i32
    return %c0_i32, %c0_i32_0 : i32, i32
  }
  func.func @transform_2(%arg0: i32) -> (i32, i32, i32) {
    %c0_i32 = arith.constant 0 : i32
    %c0_i32_0 = arith.constant 0 : i32
    %c0_i32_1 = arith.constant 0 : i32
    return %arg0, %c0_i32, %c0_i32_0 : i32, i32, i32
  }
}

module attributes {stable_mosaic.version = 11 : i64} {
  func.func @bn_relu_kernel(%arg0: i32, %arg1: memref<8x128xbf16, #tpu.memory_space<vmem>>, %arg2: memref<1x128xf32, #tpu.memory_space<vmem>>, %arg3: memref<1x128xf32, #tpu.memory_space<vmem>>, %arg4: memref<8x128xbf16, #tpu.memory_space<vmem>>) attributes {dimension_semantics = [#tpu.dimension_semantics<parallel>], iteration_bounds = array<i64: 1>, scalar_prefetch = 0 : i64, scratch_operands = 0 : i64, tpu.core_type = #tpu.core_type<tc>, window_params = [{transform_indices = @transform_0, window_bounds = array<i64: 8, 128>}, {pipeline_mode = #tpu.pipeline_mode<synchronous>, transform_indices = @transform_1, window_bounds = array<i64: 1, 128>}, {pipeline_mode = #tpu.pipeline_mode<synchronous>, transform_indices = @transform_2, window_bounds = array<i64: 1, 128>}, {transform_indices = @transform_3, window_bounds = array<i64: 8, 128>}]} {
    %c0 = arith.constant 0 : index
    %c0_0 = arith.constant 0 : index
    %0 = vector.load %arg1[%c0, %c0_0] : memref<8x128xbf16, #tpu.memory_space<vmem>>, vector<8x128xbf16>
    %1 = arith.extf %0 : vector<8x128xbf16> to vector<8x128xf32>
    %c0_1 = arith.constant 0 : index
    %c0_2 = arith.constant 0 : index
    %2 = vector.load %arg2[%c0_1, %c0_2] : memref<1x128xf32, #tpu.memory_space<vmem>>, vector<1x128xf32>
    %3 = vector.broadcast %2 : vector<1x128xf32> to vector<8x128xf32>
    %4 = arith.mulf %1, %3 : vector<8x128xf32>
    %c0_3 = arith.constant 0 : index
    %c0_4 = arith.constant 0 : index
    %5 = vector.load %arg3[%c0_3, %c0_4] : memref<1x128xf32, #tpu.memory_space<vmem>>, vector<1x128xf32>
    %6 = vector.broadcast %5 : vector<1x128xf32> to vector<8x128xf32>
    %7 = arith.addf %4, %6 : vector<8x128xf32>
    %cst = arith.constant 0.000000e+00 : f32
    %8 = vector.broadcast %cst : f32 to vector<8x128xf32>
    %9 = arith.maximumf %7, %8 : vector<8x128xf32>
    %10 = arith.truncf %9 : vector<8x128xf32> to vector<8x128xbf16>
    %c0_5 = arith.constant 0 : index
    %c0_6 = arith.constant 0 : index
    %11 = vector.load %arg4[%c0_5, %c0_6] : memref<8x128xbf16, #tpu.memory_space<vmem>>, vector<8x128xbf16>
    tpu.vector_store %arg4[%c0_5, %c0_6], %10 {strides = array<i32>} : memref<8x128xbf16, #tpu.memory_space<vmem>>, vector<8x128xbf16>,
    return
  }
  func.func @transform_0(%arg0: i32) -> (i32, i32) {
    %c0_i32 = arith.constant 0 : i32
    %c0_i32_0 = arith.constant 0 : i32
    return %arg0, %c0_i32 : i32, i32
  }
  func.func @transform_1(%arg0: i32) -> (i32, i32) {
    %c0_i32 = arith.constant 0 : i32
    %c0_i32_0 = arith.constant 0 : i32
    %c0_i32_1 = arith.constant 0 : i32
    return %c0_i32, %c0_i32_0 : i32, i32
  }
  func.func @transform_2(%arg0: i32) -> (i32, i32) {
    %c0_i32 = arith.constant 0 : i32
    %c0_i32_0 = arith.constant 0 : i32
    %c0_i32_1 = arith.constant 0 : i32
    return %c0_i32, %c0_i32_0 : i32, i32
  }
  func.func @transform_3(%arg0: i32) -> (i32, i32) {
    %c0_i32 = arith.constant 0 : i32
    %c0_i32_0 = arith.constant 0 : i32
    return %arg0, %c0_i32 : i32, i32
  }
}

module attributes {stable_mosaic.version = 11 : i64} {
  func.func @conv_y_stats_kernel(%arg0: i32, %arg1: memref<8x512xbf16, #tpu.memory_space<vmem>>, %arg2: memref<512x128xbf16, #tpu.memory_space<vmem>>, %arg3: memref<8x128xbf16, #tpu.memory_space<vmem>>, %arg4: memref<1x1x256xf32, #tpu.memory_space<vmem>>) attributes {dimension_semantics = [#tpu.dimension_semantics<parallel>], iteration_bounds = array<i64: 1>, scalar_prefetch = 0 : i64, scratch_operands = 0 : i64, tpu.core_type = #tpu.core_type<tc>, window_params = [{transform_indices = @transform_0, window_bounds = array<i64: 8, 512>}, {pipeline_mode = #tpu.pipeline_mode<synchronous>, transform_indices = @transform_1, window_bounds = array<i64: 512, 128>}, {transform_indices = @transform_2, window_bounds = array<i64: 8, 128>}, {transform_indices = @transform_3, window_bounds = array<i64: 1, 1, 256>}]} {
    %c0 = arith.constant 0 : index
    %c0_0 = arith.constant 0 : index
    %0 = vector.load %arg1[%c0, %c0_0] : memref<8x512xbf16, #tpu.memory_space<vmem>>, vector<8x512xbf16>
    %c0_1 = arith.constant 0 : index
    %c0_2 = arith.constant 0 : index
    %1 = vector.load %arg2[%c0_1, %c0_2] : memref<512x128xbf16, #tpu.memory_space<vmem>>, vector<512x128xbf16>
    %cst = arith.constant dense<0.000000e+00> : vector<8x128xf32>
    %2 = tpu.matmul %0, %1, %cst {dimension_numbers = #tpu.dot_dimension_numbers<[1], [0], [0], [1], [0, 0, 1, 1], [], []>} : vector<8x512xbf16>, vector<512x128xbf16>, vector<8x128xf32> -> vector<8x128xf32>
    %3 = arith.truncf %2 : vector<8x128xf32> to vector<8x128xbf16>
    %c0_3 = arith.constant 0 : index
    %c0_4 = arith.constant 0 : index
    %4 = vector.load %arg3[%c0_3, %c0_4] : memref<8x128xbf16, #tpu.memory_space<vmem>>, vector<8x128xbf16>
    tpu.vector_store %arg3[%c0_3, %c0_4], %3 {strides = array<i32>} : memref<8x128xbf16, #tpu.memory_space<vmem>>, vector<8x128xbf16>,
    %cst_5 = arith.constant dense<0.000000e+00> : vector<128xf32>
    %5 = vector.multi_reduction <add>, %2, %cst_5 [0] : vector<8x128xf32> to vector<128xf32>
    %6 = vector.shape_cast %5 : vector<128xf32> to vector<1x128xf32>
    %7 = arith.mulf %2, %2 : vector<8x128xf32>
    %cst_6 = arith.constant dense<0.000000e+00> : vector<128xf32>
    %8 = vector.multi_reduction <add>, %7, %cst_6 [0] : vector<8x128xf32> to vector<128xf32>
    %9 = vector.shape_cast %8 : vector<128xf32> to vector<1x128xf32>
    %10 = tpu.concatenate %6, %9 in 1 : vector<1x128xf32>, vector<1x128xf32> -> vector<1x256xf32>
    %11 = vector.shape_cast %10 : vector<1x256xf32> to vector<1x1x256xf32>
    %c0_7 = arith.constant 0 : index
    %c0_8 = arith.constant 0 : index
    %c0_9 = arith.constant 0 : index
    %12 = vector.load %arg4[%c0_7, %c0_8, %c0_9] : memref<1x1x256xf32, #tpu.memory_space<vmem>>, vector<1x1x256xf32>
    tpu.vector_store %arg4[%c0_7, %c0_8, %c0_9], %11 {strides = array<i32>} : memref<1x1x256xf32, #tpu.memory_space<vmem>>, vector<1x1x256xf32>,
    return
  }
  func.func @transform_0(%arg0: i32) -> (i32, i32) {
    %c0_i32 = arith.constant 0 : i32
    %c0_i32_0 = arith.constant 0 : i32
    return %arg0, %c0_i32 : i32, i32
  }
  func.func @transform_1(%arg0: i32) -> (i32, i32) {
    %c0_i32 = arith.constant 0 : i32
    %c0_i32_0 = arith.constant 0 : i32
    %c0_i32_1 = arith.constant 0 : i32
    return %c0_i32, %c0_i32_0 : i32, i32
  }
  func.func @transform_2(%arg0: i32) -> (i32, i32) {
    %c0_i32 = arith.constant 0 : i32
    %c0_i32_0 = arith.constant 0 : i32
    return %arg0, %c0_i32 : i32, i32
  }
  func.func @transform_3(%arg0: i32) -> (i32, i32, i32) {
    %c0_i32 = arith.constant 0 : i32
    %c0_i32_0 = arith.constant 0 : i32
    %c0_i32_1 = arith.constant 0 : i32
    return %arg0, %c0_i32, %c0_i32_0 : i32, i32, i32
  }
}

module attributes {stable_mosaic.version = 11 : i64} {
  func.func @fc_fused_kernel(%arg0: i32, %arg1: memref<8x128xbf16, #tpu.memory_space<vmem>>, %arg2: memref<128x128xbf16, #tpu.memory_space<vmem>>, %arg3: memref<1x128xf32, #tpu.memory_space<vmem>>, %arg4: memref<128x128xbf16, #tpu.memory_space<vmem>>, %arg5: memref<1x128xf32, #tpu.memory_space<vmem>>, %arg6: memref<128x128xbf16, #tpu.memory_space<vmem>>, %arg7: memref<1x128xf32, #tpu.memory_space<vmem>>, %arg8: memref<8x128xf32, #tpu.memory_space<vmem>>) attributes {dimension_semantics = [#tpu.dimension_semantics<parallel>], iteration_bounds = array<i64: 2>, scalar_prefetch = 0 : i64, scratch_operands = 0 : i64, tpu.core_type = #tpu.core_type<tc>, window_params = [{transform_indices = @transform_0, window_bounds = array<i64: 8, 128>}, {pipeline_mode = #tpu.pipeline_mode<synchronous>, transform_indices = @transform_1, window_bounds = array<i64: 128, 128>}, {pipeline_mode = #tpu.pipeline_mode<synchronous>, transform_indices = @transform_2, window_bounds = array<i64: 1, 128>}, {pipeline_mode = #tpu.pipeline_mode<synchronous>, transform_indices = @transform_3, window_bounds = array<i64: 128, 128>}, {pipeline_mode = #tpu.pipeline_mode<synchronous>, transform_indices = @transform_4, window_bounds = array<i64: 1, 128>}, {pipeline_mode = #tpu.pipeline_mode<synchronous>, transform_indices = @transform_5, window_bounds = array<i64: 128, 128>}, {pipeline_mode = #tpu.pipeline_mode<synchronous>, transform_indices = @transform_6, window_bounds = array<i64: 1, 128>}, {transform_indices = @transform_7, window_bounds = array<i64: 8, 128>}]} {
    %c0 = arith.constant 0 : index
    %c0_0 = arith.constant 0 : index
    %0 = vector.load %arg1[%c0, %c0_0] : memref<8x128xbf16, #tpu.memory_space<vmem>>, vector<8x128xbf16>
    %c0_1 = arith.constant 0 : index
    %c0_2 = arith.constant 0 : index
    %1 = vector.load %arg2[%c0_1, %c0_2] : memref<128x128xbf16, #tpu.memory_space<vmem>>, vector<128x128xbf16>
    %cst = arith.constant dense<0.000000e+00> : vector<8x128xf32>
    %2 = tpu.matmul %0, %1, %cst {dimension_numbers = #tpu.dot_dimension_numbers<[1], [0], [0], [1], [0, 0, 1, 1], [], []>} : vector<8x128xbf16>, vector<128x128xbf16>, vector<8x128xf32> -> vector<8x128xf32>
    %c0_3 = arith.constant 0 : index
    %c0_4 = arith.constant 0 : index
    %3 = vector.load %arg3[%c0_3, %c0_4] : memref<1x128xf32, #tpu.memory_space<vmem>>, vector<1x128xf32>
    %4 = vector.broadcast %3 : vector<1x128xf32> to vector<8x128xf32>
    %5 = arith.addf %2, %4 : vector<8x128xf32>
    %cst_5 = arith.constant 0.000000e+00 : f32
    %6 = vector.broadcast %cst_5 : f32 to vector<8x128xf32>
    %7 = arith.maximumf %5, %6 : vector<8x128xf32>
    %8 = arith.truncf %7 : vector<8x128xf32> to vector<8x128xbf16>
    %c0_6 = arith.constant 0 : index
    %c0_7 = arith.constant 0 : index
    %9 = vector.load %arg4[%c0_6, %c0_7] : memref<128x128xbf16, #tpu.memory_space<vmem>>, vector<128x128xbf16>
    %cst_8 = arith.constant dense<0.000000e+00> : vector<8x128xf32>
    %10 = tpu.matmul %8, %9, %cst_8 {dimension_numbers = #tpu.dot_dimension_numbers<[1], [0], [0], [1], [0, 0, 1, 1], [], []>} : vector<8x128xbf16>, vector<128x128xbf16>, vector<8x128xf32> -> vector<8x128xf32>
    %c0_9 = arith.constant 0 : index
    %c0_10 = arith.constant 0 : index
    %11 = vector.load %arg5[%c0_9, %c0_10] : memref<1x128xf32, #tpu.memory_space<vmem>>, vector<1x128xf32>
    %12 = vector.broadcast %11 : vector<1x128xf32> to vector<8x128xf32>
    %13 = arith.addf %10, %12 : vector<8x128xf32>
    %cst_11 = arith.constant 0.000000e+00 : f32
    %14 = vector.broadcast %cst_11 : f32 to vector<8x128xf32>
    %15 = arith.maximumf %13, %14 : vector<8x128xf32>
    %16 = arith.truncf %15 : vector<8x128xf32> to vector<8x128xbf16>
    %c0_12 = arith.constant 0 : index
    %c0_13 = arith.constant 0 : index
    %17 = vector.load %arg6[%c0_12, %c0_13] : memref<128x128xbf16, #tpu.memory_space<vmem>>, vector<128x128xbf16>
    %cst_14 = arith.constant dense<0.000000e+00> : vector<8x128xf32>
    %18 = tpu.matmul %16, %17, %cst_14 {dimension_numbers = #tpu.dot_dimension_numbers<[1], [0], [0], [1], [0, 0, 1, 1], [], []>} : vector<8x128xbf16>, vector<128x128xbf16>, vector<8x128xf32> -> vector<8x128xf32>
    %c0_15 = arith.constant 0 : index
    %c0_16 = arith.constant 0 : index
    %19 = vector.load %arg7[%c0_15, %c0_16] : memref<1x128xf32, #tpu.memory_space<vmem>>, vector<1x128xf32>
    %20 = vector.broadcast %19 : vector<1x128xf32> to vector<8x128xf32>
    %21 = arith.addf %18, %20 : vector<8x128xf32>
    %cst_17 = arith.constant 0.000000e+00 : f32
    %22 = vector.broadcast %cst_17 : f32 to vector<8x128xf32>
    %23 = arith.maximumf %21, %22 : vector<8x128xf32>
    %c0_18 = arith.constant 0 : index
    %c0_19 = arith.constant 0 : index
    %24 = vector.load %arg8[%c0_18, %c0_19] : memref<8x128xf32, #tpu.memory_space<vmem>>, vector<8x128xf32>
    tpu.vector_store %arg8[%c0_18, %c0_19], %23 {strides = array<i32>} : memref<8x128xf32, #tpu.memory_space<vmem>>, vector<8x128xf32>,
    return
  }
  func.func @transform_0(%arg0: i32) -> (i32, i32) {
    %c0_i32 = arith.constant 0 : i32
    %c0_i32_0 = arith.constant 0 : i32
    return %arg0, %c0_i32 : i32, i32
  }
  func.func @transform_1(%arg0: i32) -> (i32, i32) {
    %c0_i32 = arith.constant 0 : i32
    %c0_i32_0 = arith.constant 0 : i32
    %c0_i32_1 = arith.constant 0 : i32
    return %c0_i32, %c0_i32_0 : i32, i32
  }
  func.func @transform_2(%arg0: i32) -> (i32, i32) {
    %c0_i32 = arith.constant 0 : i32
    %c0_i32_0 = arith.constant 0 : i32
    %c0_i32_1 = arith.constant 0 : i32
    return %c0_i32, %c0_i32_0 : i32, i32
  }
  func.func @transform_3(%arg0: i32) -> (i32, i32) {
    %c0_i32 = arith.constant 0 : i32
    %c0_i32_0 = arith.constant 0 : i32
    %c0_i32_1 = arith.constant 0 : i32
    return %c0_i32, %c0_i32_0 : i32, i32
  }
  func.func @transform_4(%arg0: i32) -> (i32, i32) {
    %c0_i32 = arith.constant 0 : i32
    %c0_i32_0 = arith.constant 0 : i32
    %c0_i32_1 = arith.constant 0 : i32
    return %c0_i32, %c0_i32_0 : i32, i32
  }
  func.func @transform_5(%arg0: i32) -> (i32, i32) {
    %c0_i32 = arith.constant 0 : i32
    %c0_i32_0 = arith.constant 0 : i32
    %c0_i32_1 = arith.constant 0 : i32
    return %c0_i32, %c0_i32_0 : i32, i32
  }
  func.func @transform_6(%arg0: i32) -> (i32, i32) {
    %c0_i32 = arith.constant 0 : i32
    %c0_i32_0 = arith.constant 0 : i32
    %c0_i32_1 = arith.constant 0 : i32
    return %c0_i32, %c0_i32_0 : i32, i32
  }
  func.func @transform_7(%arg0: i32) -> (i32, i32) {
    %c0_i32 = arith.constant 0 : i32
    %c0_i32_0 = arith.constant 0 : i32
    return %arg0, %c0_i32 : i32, i32
  }
}

</mosaic_0001>

<llo_original>
// kernel: encoder_forward.8
$region0: #{encoder_forward.8}
  #allocation0 [shape = 'u32[]', space=smem, size = 0x4, offset = 0x4, fixed_abs, tag = 'smem constant byte address 0x4 - core index']
  #allocation1 [shape = 'u32[72,128]{1,0:T(1,128)}', space=vmem, size = 0x9000, scoped, tag = 'internal scratch']
  %s0 = inlined_call_operand.vmem [shape: bf16[128,128], index: 0, kind: input, shape index: {}]
  %s1 = inlined_call_operand.vmem [shape: bf16[128,128], index: 1, kind: input, shape index: {}]
  %s2 = inlined_call_operand.vmem [shape: f32[1,128], index: 2, kind: input, shape index: {}]
  %s3 = inlined_call_operand.vmem [shape: f32[1,128], index: 3, kind: input, shape index: {}]
  %s4 = inlined_call_operand.vmem [shape: bf16[128,128], index: 4, kind: output, shape index: {}]
  %s5 = sld [smem:[#allocation0]]
  $region49: #{encoder_forward.8} parent=0
    _
  %s7 = ssub.s32 1, %s5
  %s8 = scalar_select 0, %s7, %s5
  loop: start=0, step=1, limit=4
  $region2: #{encoder_forward.8} parent=0 // loop_pre_header
    _
  $region3: #{encoder_forward.8} parent=0 // loop_header
    %s10 = sphi 0, %s14
    %p11 = scmp.ge.s32.totalorder %s10, 4
    %s20 = sphi 0, %s22
    %s23 = sphi 0, %s20
    %s24 = sphi 0, %s23
    %s40 = sphi 0, %s24
    %s44 = sphi 0, %s44
    %s46 = sphi 0, %s44
    %s47 = sphi 0, %s46
    %s61 = sphi 0, %s47
    %s65 = sphi 0, %s65
    %s67 = sphi 0, %s65
    %s68 = sphi 0, %s67
    %s82 = sphi 0, %s68
    %s86 = sphi 0, %s86
    %s88 = sphi 0, %s86
    %s89 = sphi 0, %s88
    %s103 = sphi 0, %s89
    %s109 = sphi 0, %s111
    %s112 = sphi 0, %s109
    %s113 = sphi 0, %s112
    %s129 = sphi 0, %s113
  $region4: #{encoder_forward.8} parent=0 // loop_header_branch
    %13 = sbr.rel (%p11) target = $region8
  $region5: #{encoder_forward.8} parent=0 // loop_body
    %s15 = ssub.s32 %s10, 1
    %s16 = ssub.s32 %s10, 2
    %s17 = sadd.s32 %s10, 1
    %s18 = ssub.s32 %s10, %s17
    %p19 = scmp.eq.s32.totalorder %s18, 0
    %s21 = sadd.s32 %s20, 1
    %s22 = scalar_select %p19, %s20, %s21
    %p25 = pneg %p19
    %p26 = scmp.eq.s32.totalorder %s10, 1
    %p27 = por %p25, %p26
    %p28 = scmp.ne.s32.totalorder %s20, %s23
    %p29 = scmp.eq.s32.totalorder %s10, 0
    %p30 = por %p28, %p29
    %p31 = scmp.ne.s32.totalorder %s20, %s23
    %p32 = scmp.eq.s32.totalorder %s15, 1
    %p33 = por %p31, %p32
    %p34 = scmp.ne.s32.totalorder %s23, %s24
    %p35 = scmp.eq.s32.totalorder %s15, 0
    %p36 = por %p34, %p35
    %p37 = scmp.ne.s32.totalorder %s23, %s24
    %p38 = scmp.eq.s32.totalorder %s16, 1
    %p39 = por %p37, %p38
    %p41 = scmp.ne.s32.totalorder %s24, %s40
    %p42 = scmp.eq.s32.totalorder %s16, 0
    %p43 = por %p41, %p42
    %s45 = sadd.s32 %s44, 1
    %p48 = scmp.eq.s32.totalorder %s10, 1
    %p49 = scmp.ne.s32.totalorder %s44, %s46
    %p50 = scmp.eq.s32.totalorder %s10, 0
    %p51 = por %p49, %p50
    %p52 = scmp.ne.s32.totalorder %s44, %s46
    %p53 = scmp.eq.s32.totalorder %s15, 1
    %p54 = por %p52, %p53
    %p55 = scmp.ne.s32.totalorder %s46, %s47
    %p56 = scmp.eq.s32.totalorder %s15, 0
    %p57 = por %p55, %p56
    %p58 = scmp.ne.s32.totalorder %s46, %s47
    %p59 = scmp.eq.s32.totalorder %s16, 1
    %p60 = por %p58, %p59
    %p62 = scmp.ne.s32.totalorder %s47, %s61
    %p63 = scmp.eq.s32.totalorder %s16, 0
    %p64 = por %p62, %p63
    %s66 = sadd.s32 %s65, 1
    %p69 = scmp.eq.s32.totalorder %s10, 1
    %p70 = scmp.ne.s32.totalorder %s65, %s67
    %p71 = scmp.eq.s32.totalorder %s10, 0
    %p72 = por %p70, %p71
    %p73 = scmp.ne.s32.totalorder %s65, %s67
    %p74 = scmp.eq.s32.totalorder %s15, 1
    %p75 = por %p73, %p74
    %p76 = scmp.ne.s32.totalorder %s67, %s68
    %p77 = scmp.eq.s32.totalorder %s15, 0
    %p78 = por %p76, %p77
    %p79 = scmp.ne.s32.totalorder %s67, %s68
    %p80 = scmp.eq.s32.totalorder %s16, 1
    %p81 = por %p79, %p80
    %p83 = scmp.ne.s32.totalorder %s68, %s82
    %p84 = scmp.eq.s32.totalorder %s16, 0
    %p85 = por %p83, %p84
    %s87 = sadd.s32 %s86, 1
    %p90 = scmp.eq.s32.totalorder %s10, 1
    %p91 = scmp.ne.s32.totalorder %s86, %s88
    %p92 = scmp.eq.s32.totalorder %s10, 0
    %p93 = por %p91, %p92
    %p94 = scmp.ne.s32.totalorder %s86, %s88
    %p95 = scmp.eq.s32.totalorder %s15, 1
    %p96 = por %p94, %p95
    %p97 = scmp.ne.s32.totalorder %s88, %s89
    %p98 = scmp.eq.s32.totalorder %s15, 0
    %p99 = por %p97, %p98
    %p100 = scmp.ne.s32.totalorder %s88, %s89
    %p101 = scmp.eq.s32.totalorder %s16, 1
    %p102 = por %p100, %p101
    %p104 = scmp.ne.s32.totalorder %s89, %s103
    %p105 = scmp.eq.s32.totalorder %s16, 0
    %p106 = por %p104, %p105
    %s107 = ssub.s32 %s10, %s17
    %p108 = scmp.eq.s32.totalorder %s107, 0
    %s110 = sadd.s32 %s109, 1
    %s111 = scalar_select %p108, %s109, %s110
    %p114 = pneg %p108
    %p115 = scmp.eq.s32.totalorder %s10, 1
    %p116 = por %p114, %p115
    %p117 = scmp.ne.s32.totalorder %s109, %s112
    %p118 = scmp.eq.s32.totalorder %s10, 0
    %p119 = por %p117, %p118
    %p120 = scmp.ne.s32.totalorder %s109, %s112
    %p121 = scmp.eq.s32.totalorder %s15, 1
    %p122 = por %p120, %p121
    %p123 = scmp.ne.s32.totalorder %s112, %s113
    %p124 = scmp.eq.s32.totalorder %s15, 0
    %p125 = por %p123, %p124
    %p126 = scmp.ne.s32.totalorder %s112, %s113
    %p127 = scmp.eq.s32.totalorder %s16, 1
    %p128 = por %p126, %p127
    %p130 = scmp.ne.s32.totalorder %s113, %s129
    %p131 = scmp.eq.s32.totalorder %s16, 0
    %p132 = por %p130, %p131
    %p133 = scmp.le.s32.totalorder 1, %s10
    %p134 = scmp.lt.s32.totalorder %s10, 3
    %p135 = pnand %p133, %p134
    %p136 = pneg %p135
    // Predicated region
    $region9: #{encoder_forward.8} parent=5 // pred_check
      _
    $region10: #{encoder_forward.8} parent=5 // pred_check_branch
      %138 = sbr.rel (%p135) target = $region12
    $region11: #{encoder_forward.8} parent=5 // pred_region
      %s139 = ssub.s32 %s10, 1
      // Predicated region
      $region13: #{encoder_forward.8} parent=11 // pred_check
        %p140 = pneg %p57
      $region14: #{encoder_forward.8} parent=11 // pred_check_branch
        %142 = sbr.rel (%p140) target = $region16
      $region15: #{encoder_forward.8} parent=11 // pred_region
        _
      $region16: #{encoder_forward.8} parent=11 // pred_fallthru
        _
      // Predicated region
      $region17: #{encoder_forward.8} parent=11 // pred_check
        %p143 = pneg %p78
      $region18: #{encoder_forward.8} parent=11 // pred_check_branch
        %145 = sbr.rel (%p143) target = $region20
      $region19: #{encoder_forward.8} parent=11 // pred_region
        _
      $region20: #{encoder_forward.8} parent=11 // pred_fallthru
        _
      // Predicated region
      $region21: #{encoder_forward.8} parent=11 // pred_check
        %p146 = pneg %p99
      $region22: #{encoder_forward.8} parent=11 // pred_check_branch
        %148 = sbr.rel (%p146) target = $region24
      $region23: #{encoder_forward.8} parent=11 // pred_region
        _
      $region24: #{encoder_forward.8} parent=11 // pred_fallthru
        _
    $region12: #{encoder_forward.8} parent=5 // pred_fallthru
      _
    %p149 = scmp.lt.s32.totalorder %s10, 2
    // Predicated region
    $region25: #{encoder_forward.8} parent=5 // pred_check
      %p150 = pneg %p149
    $region26: #{encoder_forward.8} parent=5 // pred_check_branch
      %152 = sbr.rel (%p150) target = $region28
    $region27: #{encoder_forward.8} parent=5 // pred_region
      // Predicated region
      $region29: #{encoder_forward.8} parent=27 // pred_check
        %p153 = pneg %p30
      $region30: #{encoder_forward.8} parent=27 // pred_check_branch
        %155 = sbr.rel (%p153) target = $region32
      $region31: #{encoder_forward.8} parent=27 // pred_region
        %s156 = smul.u32 8, %s10
        %p157 = scmp.lt.s32.totalorder %s156, 15
        %s158 = scalar_select %p157, %s156, 15
        %s159 = smul.addr %s158, 4
        %s160 = scalar_lea.vmem %s0, %s159
        %s161 = smul.u32 8, %s10
      $region32: #{encoder_forward.8} parent=27 // pred_fallthru
        _
    $region28: #{encoder_forward.8} parent=5 // pred_fallthru
      _
    %p162 = scmp.le.s32.totalorder 1, %s10
    %p163 = scmp.lt.s32.totalorder %s10, 3
    %p164 = pnand %p162, %p163
    %p165 = pneg %p164
    // Predicated region
    $region33: #{encoder_forward.8} parent=5 // pred_check
      _
    $region34: #{encoder_forward.8} parent=5 // pred_check_branch
      %167 = sbr.rel (%p164) target = $region36
    $region35: #{encoder_forward.8} parent=5 // pred_region
      %s168 = ssub.s32 %s10, 1
      %s169 = smul.u32 8, %s15
      %p170 = scmp.lt.s32.totalorder %s169, 15
      %s171 = scalar_select %p170, %s169, 15
      %s172 = smul.addr %s171, 4
      %s173 = scalar_lea.vmem %s0, %s172
      %p174 = pneg %p36
      %p175 = pneg %p33
      %p176 = pneg %p57
      %p177 = pneg %p54
      %p178 = pneg %p78
      %p179 = pneg %p75
      %p180 = pneg %p99
      %p181 = pneg %p96
      %p182 = pneg %p125
      %p183 = pneg %p122
      %s184 = smul.u32 8, %s15
      %p185 = scmp.lt.s32.totalorder %s184, 15
      %s186 = scalar_select %p185, %s184, 15
      %s187 = smul.addr %s186, 4
      %s188 = scalar_lea.vmem %s4, %s187
      %s189 = smul.u32 8, %s15
      %p190 = scmp.lt.s32.totalorder %s189, 15
      %s191 = scalar_select %p190, %s189, 15
      %s192 = smul.addr %s191, 4
      %s193 = scalar_lea.vmem %s0, %s192
      %s194 = smul.u32 8, %s15
      %s195 = smul.u32 8, %s15
      %p196 = scmp.lt.s32.totalorder %s195, 15
      %s197 = scalar_select %p196, %s195, 15
      %s198 = smul.addr %s197, 4
      %s199 = scalar_lea.vmem %s4, %s198
      %s200 = smul.u32 8, %s15
      %v201 = vld [vmem:[%s193] sm:$0xf]
      %v202 = vld [vmem:[%s193 + $0x4] sm:$0xf]
      %v203 = vld [vmem:[%s193 + $0x8] sm:$0xf]
      %v204 = vld [vmem:[%s193 + $0xc] sm:$0xf]
      %v205 = vld [vmem:[%s193 + $0x10] sm:$0xf]
      %v206 = vld [vmem:[%s193 + $0x14] sm:$0xf]
      %v207 = vld [vmem:[%s193 + $0x18] sm:$0xf]
      %v208 = vld [vmem:[%s193 + $0x1c] sm:$0xf]
      %v209 = vld [vmem:[%s1] sm:$0xf]
      %v210 = vld [vmem:[%s1 + $0x4] sm:$0xf]
      %v211 = vld [vmem:[%s1 + $0x8] sm:$0xf]
      %v212 = vld [vmem:[%s1 + $0xc] sm:$0xf]
      %v213 = vld [vmem:[%s1 + $0x10] sm:$0xf]
      %v214 = vld [vmem:[%s1 + $0x14] sm:$0xf]
      %v215 = vld [vmem:[%s1 + $0x18] sm:$0xf]
      %v216 = vld [vmem:[%s1 + $0x1c] sm:$0xf]
      %v217 = vld [vmem:[%s1 + $0x20] sm:$0xf]
      %v218 = vld [vmem:[%s1 + $0x24] sm:$0xf]
      %v219 = vld [vmem:[%s1 + $0x28] sm:$0xf]
      %v220 = vld [vmem:[%s1 + $0x2c] sm:$0xf]
      %v221 = vld [vmem:[%s1 + $0x30] sm:$0xf]
      %v222 = vld [vmem:[%s1 + $0x34] sm:$0xf]
      %v223 = vld [vmem:[%s1 + $0x38] sm:$0xf]
      %v224 = vld [vmem:[%s1 + $0x3c] sm:$0xf]
      %v233 = vunpack.c.l.b16 %v201
      %v234 = vunpack.c.l.b16 %v202
      %v235 = vunpack.c.l.b16 %v203
      %v236 = vunpack.c.l.b16 %v204
      %v237 = vunpack.c.l.b16 %v205
      %v238 = vunpack.c.l.b16 %v206
      %v239 = vunpack.c.l.b16 %v207
      %v240 = vunpack.c.l.b16 %v208
      %v241 = vpack.c.b16 %v234, %v233
      %v242 = vpack.c.b16 %v236, %v235
      %v243 = vpack.c.b16 %v238, %v237
      %v244 = vpack.c.b16 %v240, %v239
      %v265 = vunpack.c.l.b16 %v209
      %v266 = vunpack.c.l.b16 %v210
      %v267 = vunpack.c.l.b16 %v211
      %v268 = vunpack.c.l.b16 %v212
      %v269 = vunpack.c.l.b16 %v213
      %v270 = vunpack.c.l.b16 %v214
      %v271 = vunpack.c.l.b16 %v215
      %v272 = vunpack.c.l.b16 %v216
      %v273 = vunpack.c.l.b16 %v217
      %v274 = vunpack.c.l.b16 %v218
      %v275 = vunpack.c.l.b16 %v219
      %v276 = vunpack.c.l.b16 %v220
      %v277 = vunpack.c.l.b16 %v221
      %v278 = vunpack.c.l.b16 %v222
      %v279 = vunpack.c.l.b16 %v223
      %v280 = vunpack.c.l.b16 %v224
      %v281 = vpack.c.b16 %v266, %v265
      %v282 = vpack.c.b16 %v268, %v267
      %v283 = vpack.c.b16 %v270, %v269
      %v284 = vpack.c.b16 %v272, %v271
      %v285 = vpack.c.b16 %v274, %v273
      %v286 = vpack.c.b16 %v276, %v275
      %v287 = vpack.c.b16 %v278, %v277
      %v288 = vpack.c.b16 %v280, %v279
      %297 = vmatpush.bf16.msra.mxu0 %v288
      %298 = vmatpush.bf16.msra.mxu0 %v287
      %299 = vmatpush.bf16.msra.mxu0 %v286
      %300 = vmatpush.bf16.msra.mxu0 %v285
      %301 = vmatpush.bf16.msra.mxu0 %v284
      %302 = vmatpush.bf16.msra.mxu0 %v283
      %303 = vmatpush.bf16.msra.mxu0 %v282
      %304 = vmatpush.bf16.msra.mxu0 %v281
      %305 = vmatmul.bf16.gmra.mxu0 %v241
      %v306 = vpop.f32.mrf.mxu0
      %v307 = vadd.f32 0.0, %v306
      %v308 = vpop.f32.mrf.mxu0
      %v309 = vadd.f32 0.0, %v308
      %310 = vmatmul.bf16.gmra.mxu0 %v242
      %v311 = vpop.f32.mrf.mxu0
      %v312 = vadd.f32 0.0, %v311
      %v313 = vpop.f32.mrf.mxu0
      %v314 = vadd.f32 0.0, %v313
      %315 = vmatmul.bf16.gmra.mxu0 %v243
      %v316 = vpop.f32.mrf.mxu0
      %v317 = vadd.f32 0.0, %v316
      %v318 = vpop.f32.mrf.mxu0
      %v319 = vadd.f32 0.0, %v318
      %320 = vmatmul.bf16.gmra.mxu0 %v244
      %v321 = vpop.f32.mrf.mxu0
      %v322 = vadd.f32 0.0, %v321
      %v323 = vpop.f32.mrf.mxu0
      %v324 = vadd.f32 0.0, %v323
      %325 = vdwg.mxu0
      %v326 = vld [vmem:[%s2] sm:$0x1]
      %v328 = vperm.slane %v326, 0
      %v330 = vmul.f32 %v307, %v328
      %v331 = vmul.f32 %v309, %v328
      %v332 = vmul.f32 %v312, %v328
      %v333 = vmul.f32 %v314, %v328
      %v334 = vmul.f32 %v317, %v328
      %v335 = vmul.f32 %v319, %v328
      %v336 = vmul.f32 %v322, %v328
      %v337 = vmul.f32 %v324, %v328
      %v338 = vld [vmem:[%s3] sm:$0x1]
      %v340 = vperm.slane %v338, 0
      %v342 = vadd.f32 %v330, %v340
      %v343 = vadd.f32 %v331, %v340
      %v344 = vadd.f32 %v332, %v340
      %v345 = vadd.f32 %v333, %v340
      %v346 = vadd.f32 %v334, %v340
      %v347 = vadd.f32 %v335, %v340
      %v348 = vadd.f32 %v336, %v340
      %v349 = vadd.f32 %v337, %v340
      %v350 = vmax.f32 %v342, 0.0
      %v351 = vmax.f32 %v343, 0.0
      %v352 = vmax.f32 %v344, 0.0
      %v353 = vmax.f32 %v345, 0.0
      %v354 = vmax.f32 %v346, 0.0
      %v355 = vmax.f32 %v347, 0.0
      %v356 = vmax.f32 %v348, 0.0
      %v357 = vmax.f32 %v349, 0.0
      %v358 = vpack.c.bf16 %v350, %v350
      %v359 = vpack.c.bf16 %v351, %v351
      %v360 = vpack.c.bf16 %v352, %v352
      %v361 = vpack.c.bf16 %v353, %v353
      %v362 = vpack.c.bf16 %v354, %v354
      %v363 = vpack.c.bf16 %v355, %v355
      %v364 = vpack.c.bf16 %v356, %v356
      %v365 = vpack.c.bf16 %v357, %v357
      %366 = vst [vmem:[%s199] sm:$0xf] %v358
      %367 = vst [vmem:[%s199 + $0x4] sm:$0xf] %v359
      %368 = vst [vmem:[%s199 + $0x8] sm:$0xf] %v360
      %369 = vst [vmem:[%s199 + $0xc] sm:$0xf] %v361
      %370 = vst [vmem:[%s199 + $0x10] sm:$0xf] %v362
      %371 = vst [vmem:[%s199 + $0x14] sm:$0xf] %v363
      %372 = vst [vmem:[%s199 + $0x18] sm:$0xf] %v364
      %373 = vst [vmem:[%s199 + $0x1c] sm:$0xf] %v365
      %s374 = smul.u32 8, %s15
      %p375 = scmp.lt.s32.totalorder %s374, 15
      %s376 = scalar_select %p375, %s374, 15
      %s377 = smul.addr %s376, 4
      %s378 = scalar_lea.vmem %s4, %s377
      // Predicated region
      $region37: #{encoder_forward.8} parent=35 // pred_check
        %p379 = pneg %p122
      $region38: #{encoder_forward.8} parent=35 // pred_check_branch
        %381 = sbr.rel (%p379) target = $region40
      $region39: #{encoder_forward.8} parent=35 // pred_region
        %s382 = smul.u32 8, %s15
      $region40: #{encoder_forward.8} parent=35 // pred_fallthru
        _
    $region36: #{encoder_forward.8} parent=5 // pred_fallthru
      _
    %p383 = scmp.le.s32.totalorder 2, %s10
    // Predicated region
    $region41: #{encoder_forward.8} parent=5 // pred_check
      %p384 = pneg %p383
    $region42: #{encoder_forward.8} parent=5 // pred_check_branch
      %386 = sbr.rel (%p384) target = $region44
    $region43: #{encoder_forward.8} parent=5 // pred_region
      %s387 = ssub.s32 %s10, 2
      // Predicated region
      $region45: #{encoder_forward.8} parent=43 // pred_check
        %p388 = pneg %p128
      $region46: #{encoder_forward.8} parent=43 // pred_check_branch
        %390 = sbr.rel (%p388) target = $region48
      $region47: #{encoder_forward.8} parent=43 // pred_region
        %s391 = smul.u32 8, %s16
        %p392 = scmp.lt.s32.totalorder %s391, 15
        %s393 = scalar_select %p392, %s391, 15
        %s394 = smul.addr %s393, 4
        %s395 = scalar_lea.vmem %s4, %s394
      $region48: #{encoder_forward.8} parent=43 // pred_fallthru
        _
    $region44: #{encoder_forward.8} parent=5 // pred_fallthru
      _
  $region6: #{encoder_forward.8} parent=0 // loop_footer
    %s14 = sadd.s32 1, %s10
  $region7: #{encoder_forward.8} parent=0 // loop_footer_branch
    %9 = sbr.rel target = $region3
  $region8: #{encoder_forward.8} parent=0 // loop_exit
    _

// kernel: encoder_forward.7
$region0: #{encoder_forward.7}
  #allocation0 [shape = 'u32[]', space=smem, size = 0x4, offset = 0x4, fixed_abs, tag = 'smem constant byte address 0x4 - core index']
  #allocation1 [shape = 'u32[72,128]{1,0:T(1,128)}', space=vmem, size = 0x9000, scoped, tag = 'internal scratch']
  %s0 = inlined_call_operand.vmem [shape: bf16[128,128], index: 0, kind: input, shape index: {}]
  %s1 = inlined_call_operand.vmem [shape: bf16[128,128], index: 1, kind: input, shape index: {}]
  %s2 = inlined_call_operand.vmem [shape: f32[2,1,256], index: 2, kind: output, shape index: {}]
  %s3 = sld [smem:[#allocation0]]
  $region41: #{encoder_forward.7} parent=0
    _
  %s5 = ssub.s32 1, %s3
  %s6 = scalar_select 0, %s5, %s3
  loop: start=0, step=1, limit=4
  $region2: #{encoder_forward.7} parent=0 // loop_pre_header
    _
  $region3: #{encoder_forward.7} parent=0 // loop_header
    %s8 = sphi 0, %s12
    %p9 = scmp.ge.s32.totalorder %s8, 4
    %s18 = sphi 0, %s20
    %s21 = sphi 0, %s18
    %s22 = sphi 0, %s21
    %s38 = sphi 0, %s22
    %s42 = sphi 0, %s42
    %s44 = sphi 0, %s42
    %s45 = sphi 0, %s44
    %s59 = sphi 0, %s45
    %s65 = sphi 0, %s67
    %s68 = sphi 0, %s65
    %s69 = sphi 0, %s68
    %s85 = sphi 0, %s69
  $region4: #{encoder_forward.7} parent=0 // loop_header_branch
    %11 = sbr.rel (%p9) target = $region8
  $region5: #{encoder_forward.7} parent=0 // loop_body
    %s13 = ssub.s32 %s8, 1
    %s14 = ssub.s32 %s8, 2
    %s15 = sadd.s32 %s8, 1
    %s16 = ssub.s32 %s8, %s15
    %p17 = scmp.eq.s32.totalorder %s16, 0
    %s19 = sadd.s32 %s18, 1
    %s20 = scalar_select %p17, %s18, %s19
    %p23 = pneg %p17
    %p24 = scmp.eq.s32.totalorder %s8, 1
    %p25 = por %p23, %p24
    %p26 = scmp.ne.s32.totalorder %s18, %s21
    %p27 = scmp.eq.s32.totalorder %s8, 0
    %p28 = por %p26, %p27
    %p29 = scmp.ne.s32.totalorder %s18, %s21
    %p30 = scmp.eq.s32.totalorder %s13, 1
    %p31 = por %p29, %p30
    %p32 = scmp.ne.s32.totalorder %s21, %s22
    %p33 = scmp.eq.s32.totalorder %s13, 0
    %p34 = por %p32, %p33
    %p35 = scmp.ne.s32.totalorder %s21, %s22
    %p36 = scmp.eq.s32.totalorder %s14, 1
    %p37 = por %p35, %p36
    %p39 = scmp.ne.s32.totalorder %s22, %s38
    %p40 = scmp.eq.s32.totalorder %s14, 0
    %p41 = por %p39, %p40
    %s43 = sadd.s32 %s42, 1
    %p46 = scmp.eq.s32.totalorder %s8, 1
    %p47 = scmp.ne.s32.totalorder %s42, %s44
    %p48 = scmp.eq.s32.totalorder %s8, 0
    %p49 = por %p47, %p48
    %p50 = scmp.ne.s32.totalorder %s42, %s44
    %p51 = scmp.eq.s32.totalorder %s13, 1
    %p52 = por %p50, %p51
    %p53 = scmp.ne.s32.totalorder %s44, %s45
    %p54 = scmp.eq.s32.totalorder %s13, 0
    %p55 = por %p53, %p54
    %p56 = scmp.ne.s32.totalorder %s44, %s45
    %p57 = scmp.eq.s32.totalorder %s14, 1
    %p58 = por %p56, %p57
    %p60 = scmp.ne.s32.totalorder %s45, %s59
    %p61 = scmp.eq.s32.totalorder %s14, 0
    %p62 = por %p60, %p61
    %s63 = ssub.s32 %s8, %s15
    %p64 = scmp.eq.s32.totalorder %s63, 0
    %s66 = sadd.s32 %s65, 1
    %s67 = scalar_select %p64, %s65, %s66
    %p70 = pneg %p64
    %p71 = scmp.eq.s32.totalorder %s8, 1
    %p72 = por %p70, %p71
    %p73 = scmp.ne.s32.totalorder %s65, %s68
    %p74 = scmp.eq.s32.totalorder %s8, 0
    %p75 = por %p73, %p74
    %p76 = scmp.ne.s32.totalorder %s65, %s68
    %p77 = scmp.eq.s32.totalorder %s13, 1
    %p78 = por %p76, %p77
    %p79 = scmp.ne.s32.totalorder %s68, %s69
    %p80 = scmp.eq.s32.totalorder %s13, 0
    %p81 = por %p79, %p80
    %p82 = scmp.ne.s32.totalorder %s68, %s69
    %p83 = scmp.eq.s32.totalorder %s14, 1
    %p84 = por %p82, %p83
    %p86 = scmp.ne.s32.totalorder %s69, %s85
    %p87 = scmp.eq.s32.totalorder %s14, 0
    %p88 = por %p86, %p87
    %p89 = scmp.le.s32.totalorder 1, %s8
    %p90 = scmp.lt.s32.totalorder %s8, 3
    %p91 = pnand %p89, %p90
    %p92 = pneg %p91
    // Predicated region
    $region9: #{encoder_forward.7} parent=5 // pred_check
      _
    $region10: #{encoder_forward.7} parent=5 // pred_check_branch
      %94 = sbr.rel (%p91) target = $region12
    $region11: #{encoder_forward.7} parent=5 // pred_region
      %s95 = ssub.s32 %s8, 1
      // Predicated region
      $region13: #{encoder_forward.7} parent=11 // pred_check
        %p96 = pneg %p55
      $region14: #{encoder_forward.7} parent=11 // pred_check_branch
        %98 = sbr.rel (%p96) target = $region16
      $region15: #{encoder_forward.7} parent=11 // pred_region
        _
      $region16: #{encoder_forward.7} parent=11 // pred_fallthru
        _
    $region12: #{encoder_forward.7} parent=5 // pred_fallthru
      _
    %p99 = scmp.lt.s32.totalorder %s8, 2
    // Predicated region
    $region17: #{encoder_forward.7} parent=5 // pred_check
      %p100 = pneg %p99
    $region18: #{encoder_forward.7} parent=5 // pred_check_branch
      %102 = sbr.rel (%p100) target = $region20
    $region19: #{encoder_forward.7} parent=5 // pred_region
      // Predicated region
      $region21: #{encoder_forward.7} parent=19 // pred_check
        %p103 = pneg %p28
      $region22: #{encoder_forward.7} parent=19 // pred_check_branch
        %105 = sbr.rel (%p103) target = $region24
      $region23: #{encoder_forward.7} parent=19 // pred_region
        %s106 = smul.u32 8, %s8
        %p107 = scmp.lt.s32.totalorder %s106, 15
        %s108 = scalar_select %p107, %s106, 15
        %s109 = smul.addr %s108, 4
        %s110 = scalar_lea.vmem %s0, %s109
        %s111 = smul.u32 8, %s8
      $region24: #{encoder_forward.7} parent=19 // pred_fallthru
        _
    $region20: #{encoder_forward.7} parent=5 // pred_fallthru
      _
    %p112 = scmp.le.s32.totalorder 1, %s8
    %p113 = scmp.lt.s32.totalorder %s8, 3
    %p114 = pnand %p112, %p113
    %p115 = pneg %p114
    // Predicated region
    $region25: #{encoder_forward.7} parent=5 // pred_check
      _
    $region26: #{encoder_forward.7} parent=5 // pred_check_branch
      %117 = sbr.rel (%p114) target = $region28
    $region27: #{encoder_forward.7} parent=5 // pred_region
      %s118 = ssub.s32 %s8, 1
      %s119 = smul.u32 8, %s13
      %p120 = scmp.lt.s32.totalorder %s119, 15
      %s121 = scalar_select %p120, %s119, 15
      %s122 = smul.addr %s121, 4
      %s123 = scalar_lea.vmem %s0, %s122
      %p124 = pneg %p34
      %p125 = pneg %p31
      %p126 = pneg %p55
      %p127 = pneg %p52
      %p128 = pneg %p81
      %p129 = pneg %p78
      %p130 = scmp.lt.s32.totalorder %s13, 1
      %s131 = scalar_select %p130, %s13, 1
      %s132 = smul.addr %s131, 2
      %s133 = scalar_lea.vmem %s2, %s132
      %s134 = smul.u32 8, %s13
      %p135 = scmp.lt.s32.totalorder %s134, 15
      %s136 = scalar_select %p135, %s134, 15
      %s137 = smul.addr %s136, 4
      %s138 = scalar_lea.vmem %s0, %s137
      %s139 = smul.u32 8, %s13
      %p140 = scmp.lt.s32.totalorder %s13, 1
      %s141 = scalar_select %p140, %s13, 1
      %s142 = smul.addr %s141, 2
      %s143 = scalar_lea.vmem %s2, %s142
      %v144 = vld [vmem:[%s138] sm:$0xf]
      %v145 = vld [vmem:[%s138 + $0x4] sm:$0xf]
      %v146 = vld [vmem:[%s138 + $0x8] sm:$0xf]
      %v147 = vld [vmem:[%s138 + $0xc] sm:$0xf]
      %v148 = vld [vmem:[%s138 + $0x10] sm:$0xf]
      %v149 = vld [vmem:[%s138 + $0x14] sm:$0xf]
      %v150 = vld [vmem:[%s138 + $0x18] sm:$0xf]
      %v151 = vld [vmem:[%s138 + $0x1c] sm:$0xf]
      %v152 = vld [vmem:[%s1] sm:$0xf]
      %v153 = vld [vmem:[%s1 + $0x4] sm:$0xf]
      %v154 = vld [vmem:[%s1 + $0x8] sm:$0xf]
      %v155 = vld [vmem:[%s1 + $0xc] sm:$0xf]
      %v156 = vld [vmem:[%s1 + $0x10] sm:$0xf]
      %v157 = vld [vmem:[%s1 + $0x14] sm:$0xf]
      %v158 = vld [vmem:[%s1 + $0x18] sm:$0xf]
      %v159 = vld [vmem:[%s1 + $0x1c] sm:$0xf]
      %v160 = vld [vmem:[%s1 + $0x20] sm:$0xf]
      %v161 = vld [vmem:[%s1 + $0x24] sm:$0xf]
      %v162 = vld [vmem:[%s1 + $0x28] sm:$0xf]
      %v163 = vld [vmem:[%s1 + $0x2c] sm:$0xf]
      %v164 = vld [vmem:[%s1 + $0x30] sm:$0xf]
      %v165 = vld [vmem:[%s1 + $0x34] sm:$0xf]
      %v166 = vld [vmem:[%s1 + $0x38] sm:$0xf]
      %v167 = vld [vmem:[%s1 + $0x3c] sm:$0xf]
      %v176 = vunpack.c.l.b16 %v144
      %v177 = vunpack.c.l.b16 %v145
      %v178 = vunpack.c.l.b16 %v146
      %v179 = vunpack.c.l.b16 %v147
      %v180 = vunpack.c.l.b16 %v148
      %v181 = vunpack.c.l.b16 %v149
      %v182 = vunpack.c.l.b16 %v150
      %v183 = vunpack.c.l.b16 %v151
      %v184 = vpack.c.b16 %v177, %v176
      %v185 = vpack.c.b16 %v179, %v178
      %v186 = vpack.c.b16 %v181, %v180
      %v187 = vpack.c.b16 %v183, %v182
      %v208 = vunpack.c.l.b16 %v152
      %v209 = vunpack.c.l.b16 %v153
      %v210 = vunpack.c.l.b16 %v154
      %v211 = vunpack.c.l.b16 %v155
      %v212 = vunpack.c.l.b16 %v156
      %v213 = vunpack.c.l.b16 %v157
      %v214 = vunpack.c.l.b16 %v158
      %v215 = vunpack.c.l.b16 %v159
      %v216 = vunpack.c.l.b16 %v160
      %v217 = vunpack.c.l.b16 %v161
      %v218 = vunpack.c.l.b16 %v162
      %v219 = vunpack.c.l.b16 %v163
      %v220 = vunpack.c.l.b16 %v164
      %v221 = vunpack.c.l.b16 %v165
      %v222 = vunpack.c.l.b16 %v166
      %v223 = vunpack.c.l.b16 %v167
      %v224 = vpack.c.b16 %v209, %v208
      %v225 = vpack.c.b16 %v211, %v210
      %v226 = vpack.c.b16 %v213, %v212
      %v227 = vpack.c.b16 %v215, %v214
      %v228 = vpack.c.b16 %v217, %v216
      %v229 = vpack.c.b16 %v219, %v218
      %v230 = vpack.c.b16 %v221, %v220
      %v231 = vpack.c.b16 %v223, %v222
      %240 = vmatpush.bf16.msra.mxu0 %v231
      %241 = vmatpush.bf16.msra.mxu0 %v230
      %242 = vmatpush.bf16.msra.mxu0 %v229
      %243 = vmatpush.bf16.msra.mxu0 %v228
      %244 = vmatpush.bf16.msra.mxu0 %v227
      %245 = vmatpush.bf16.msra.mxu0 %v226
      %246 = vmatpush.bf16.msra.mxu0 %v225
      %247 = vmatpush.bf16.msra.mxu0 %v224
      %248 = vmatmul.bf16.gmra.mxu0 %v184
      %v249 = vpop.f32.mrf.mxu0
      %v250 = vadd.f32 0.0, %v249
      %v251 = vpop.f32.mrf.mxu0
      %v252 = vadd.f32 0.0, %v251
      %253 = vmatmul.bf16.gmra.mxu0 %v185
      %v254 = vpop.f32.mrf.mxu0
      %v255 = vadd.f32 0.0, %v254
      %v256 = vpop.f32.mrf.mxu0
      %v257 = vadd.f32 0.0, %v256
      %258 = vmatmul.bf16.gmra.mxu0 %v186
      %v259 = vpop.f32.mrf.mxu0
      %v260 = vadd.f32 0.0, %v259
      %v261 = vpop.f32.mrf.mxu0
      %v262 = vadd.f32 0.0, %v261
      %263 = vmatmul.bf16.gmra.mxu0 %v187
      %v264 = vpop.f32.mrf.mxu0
      %v265 = vadd.f32 0.0, %v264
      %v266 = vpop.f32.mrf.mxu0
      %v267 = vadd.f32 0.0, %v266
      %268 = vdwg.mxu0
      %v269 = vadd.f32 %v250, %v252
      %v270 = vadd.f32 %v269, %v255
      %v271 = vadd.f32 %v270, %v257
      %v272 = vadd.f32 %v271, %v260
      %v273 = vadd.f32 %v272, %v262
      %v274 = vadd.f32 %v273, %v265
      %v275 = vadd.f32 %v274, %v267
      %v276 = vrot.slane %v275, 4
      %v277 = vadd.f32 %v275, %v276
      %v278 = vrot.slane %v277, 2
      %v279 = vadd.f32 %v277, %v278
      %v280 = vrot.slane %v279, 1
      %v281 = vadd.f32 %v279, %v280
      %v282 = vmul.f32 %v250, %v250
      %v283 = vmul.f32 %v252, %v252
      %v284 = vmul.f32 %v255, %v255
      %v285 = vmul.f32 %v257, %v257
      %v286 = vmul.f32 %v260, %v260
      %v287 = vmul.f32 %v262, %v262
      %v288 = vmul.f32 %v265, %v265
      %v289 = vmul.f32 %v267, %v267
      %v290 = vadd.f32 %v282, %v283
      %v291 = vadd.f32 %v290, %v284
      %v292 = vadd.f32 %v291, %v285
      %v293 = vadd.f32 %v292, %v286
      %v294 = vadd.f32 %v293, %v287
      %v295 = vadd.f32 %v294, %v288
      %v296 = vadd.f32 %v295, %v289
      %v297 = vrot.slane %v296, 4
      %v298 = vadd.f32 %v296, %v297
      %v299 = vrot.slane %v298, 2
      %v300 = vadd.f32 %v298, %v299
      %v301 = vrot.slane %v300, 1
      %v302 = vadd.f32 %v300, %v301
      %v305 = vrot.slane %v302, 7
      %vm306 = vcmask 1040384
      %v307 = vsel %vm306, %v281, %v305
      %v309 = vlaneseq
      %vm310 = vcmp.ge.s32.totalorder %v309, 0
      %vm311 = vcmp.lt.s32.totalorder %v309, 256
      %vm312 = vmand %vm310, %vm311
      %313 = vst.msk [vmem:[%s143] sm:$0x3] %vm312, %v307
      %p314 = scmp.lt.s32.totalorder %s13, 1
      %s315 = scalar_select %p314, %s13, 1
      %s316 = smul.addr %s315, 2
      %s317 = scalar_lea.vmem %s2, %s316
      // Predicated region
      $region29: #{encoder_forward.7} parent=27 // pred_check
        %p318 = pneg %p78
      $region30: #{encoder_forward.7} parent=27 // pred_check_branch
        %320 = sbr.rel (%p318) target = $region32
      $region31: #{encoder_forward.7} parent=27 // pred_region
        _
      $region32: #{encoder_forward.7} parent=27 // pred_fallthru
        _
    $region28: #{encoder_forward.7} parent=5 // pred_fallthru
      _
    %p321 = scmp.le.s32.totalorder 2, %s8
    // Predicated region
    $region33: #{encoder_forward.7} parent=5 // pred_check
      %p322 = pneg %p321
    $region34: #{encoder_forward.7} parent=5 // pred_check_branch
      %324 = sbr.rel (%p322) target = $region36
    $region35: #{encoder_forward.7} parent=5 // pred_region
      %s325 = ssub.s32 %s8, 2
      // Predicated region
      $region37: #{encoder_forward.7} parent=35 // pred_check
        %p326 = pneg %p84
      $region38: #{encoder_forward.7} parent=35 // pred_check_branch
        %328 = sbr.rel (%p326) target = $region40
      $region39: #{encoder_forward.7} parent=35 // pred_region
        %p329 = scmp.lt.s32.totalorder %s14, 1
        %s330 = scalar_select %p329, %s14, 1
        %s331 = smul.addr %s330, 2
        %s332 = scalar_lea.vmem %s2, %s331
      $region40: #{encoder_forward.7} parent=35 // pred_fallthru
        _
    $region36: #{encoder_forward.7} parent=5 // pred_fallthru
      _
  $region6: #{encoder_forward.7} parent=0 // loop_footer
    %s12 = sadd.s32 1, %s8
  $region7: #{encoder_forward.7} parent=0 // loop_footer_branch
    %7 = sbr.rel target = $region3
  $region8: #{encoder_forward.7} parent=0 // loop_exit
    _

// kernel: encoder_forward.9
$region0: #{encoder_forward.9}
  #allocation0 [shape = 'u32[]', space=smem, size = 0x4, offset = 0x4, fixed_abs, tag = 'smem constant byte address 0x4 - core index']
  #allocation1 [shape = 'u32[72,128]{1,0:T(1,128)}', space=vmem, size = 0x9000, scoped, tag = 'internal scratch']
  %s0 = inlined_call_operand.vmem [shape: bf16[32,256], index: 0, kind: input, shape index: {}]
  %s1 = inlined_call_operand.vmem [shape: bf16[256,128], index: 1, kind: input, shape index: {}]
  %s2 = inlined_call_operand.vmem [shape: f32[2,1,256], index: 2, kind: output, shape index: {}]
  %s3 = sld [smem:[#allocation0]]
  $region41: #{encoder_forward.9} parent=0
    _
  %s5 = ssub.s32 1, %s3
  %s6 = scalar_select 0, %s5, %s3
  loop: start=0, step=1, limit=4
  $region2: #{encoder_forward.9} parent=0 // loop_pre_header
    _
  $region3: #{encoder_forward.9} parent=0 // loop_header
    %s8 = sphi 0, %s12
    %p9 = scmp.ge.s32.totalorder %s8, 4
    %s18 = sphi 0, %s20
    %s21 = sphi 0, %s18
    %s22 = sphi 0, %s21
    %s38 = sphi 0, %s22
    %s42 = sphi 0, %s42
    %s44 = sphi 0, %s42
    %s45 = sphi 0, %s44
    %s59 = sphi 0, %s45
    %s65 = sphi 0, %s67
    %s68 = sphi 0, %s65
    %s69 = sphi 0, %s68
    %s85 = sphi 0, %s69
  $region4: #{encoder_forward.9} parent=0 // loop_header_branch
    %11 = sbr.rel (%p9) target = $region8
  $region5: #{encoder_forward.9} parent=0 // loop_body
    %s13 = ssub.s32 %s8, 1
    %s14 = ssub.s32 %s8, 2
    %s15 = sadd.s32 %s8, 1
    %s16 = ssub.s32 %s8, %s15
    %p17 = scmp.eq.s32.totalorder %s16, 0
    %s19 = sadd.s32 %s18, 1
    %s20 = scalar_select %p17, %s18, %s19
    %p23 = pneg %p17
    %p24 = scmp.eq.s32.totalorder %s8, 1
    %p25 = por %p23, %p24
    %p26 = scmp.ne.s32.totalorder %s18, %s21
    %p27 = scmp.eq.s32.totalorder %s8, 0
    %p28 = por %p26, %p27
    %p29 = scmp.ne.s32.totalorder %s18, %s21
    %p30 = scmp.eq.s32.totalorder %s13, 1
    %p31 = por %p29, %p30
    %p32 = scmp.ne.s32.totalorder %s21, %s22
    %p33 = scmp.eq.s32.totalorder %s13, 0
    %p34 = por %p32, %p33
    %p35 = scmp.ne.s32.totalorder %s21, %s22
    %p36 = scmp.eq.s32.totalorder %s14, 1
    %p37 = por %p35, %p36
    %p39 = scmp.ne.s32.totalorder %s22, %s38
    %p40 = scmp.eq.s32.totalorder %s14, 0
    %p41 = por %p39, %p40
    %s43 = sadd.s32 %s42, 1
    %p46 = scmp.eq.s32.totalorder %s8, 1
    %p47 = scmp.ne.s32.totalorder %s42, %s44
    %p48 = scmp.eq.s32.totalorder %s8, 0
    %p49 = por %p47, %p48
    %p50 = scmp.ne.s32.totalorder %s42, %s44
    %p51 = scmp.eq.s32.totalorder %s13, 1
    %p52 = por %p50, %p51
    %p53 = scmp.ne.s32.totalorder %s44, %s45
    %p54 = scmp.eq.s32.totalorder %s13, 0
    %p55 = por %p53, %p54
    %p56 = scmp.ne.s32.totalorder %s44, %s45
    %p57 = scmp.eq.s32.totalorder %s14, 1
    %p58 = por %p56, %p57
    %p60 = scmp.ne.s32.totalorder %s45, %s59
    %p61 = scmp.eq.s32.totalorder %s14, 0
    %p62 = por %p60, %p61
    %s63 = ssub.s32 %s8, %s15
    %p64 = scmp.eq.s32.totalorder %s63, 0
    %s66 = sadd.s32 %s65, 1
    %s67 = scalar_select %p64, %s65, %s66
    %p70 = pneg %p64
    %p71 = scmp.eq.s32.totalorder %s8, 1
    %p72 = por %p70, %p71
    %p73 = scmp.ne.s32.totalorder %s65, %s68
    %p74 = scmp.eq.s32.totalorder %s8, 0
    %p75 = por %p73, %p74
    %p76 = scmp.ne.s32.totalorder %s65, %s68
    %p77 = scmp.eq.s32.totalorder %s13, 1
    %p78 = por %p76, %p77
    %p79 = scmp.ne.s32.totalorder %s68, %s69
    %p80 = scmp.eq.s32.totalorder %s13, 0
    %p81 = por %p79, %p80
    %p82 = scmp.ne.s32.totalorder %s68, %s69
    %p83 = scmp.eq.s32.totalorder %s14, 1
    %p84 = por %p82, %p83
    %p86 = scmp.ne.s32.totalorder %s69, %s85
    %p87 = scmp.eq.s32.totalorder %s14, 0
    %p88 = por %p86, %p87
    %p89 = scmp.le.s32.totalorder 1, %s8
    %p90 = scmp.lt.s32.totalorder %s8, 3
    %p91 = pnand %p89, %p90
    %p92 = pneg %p91
    // Predicated region
    $region9: #{encoder_forward.9} parent=5 // pred_check
      _
    $region10: #{encoder_forward.9} parent=5 // pred_check_branch
      %94 = sbr.rel (%p91) target = $region12
    $region11: #{encoder_forward.9} parent=5 // pred_region
      %s95 = ssub.s32 %s8, 1
      // Predicated region
      $region13: #{encoder_forward.9} parent=11 // pred_check
        %p96 = pneg %p55
      $region14: #{encoder_forward.9} parent=11 // pred_check_branch
        %98 = sbr.rel (%p96) target = $region16
      $region15: #{encoder_forward.9} parent=11 // pred_region
        _
      $region16: #{encoder_forward.9} parent=11 // pred_fallthru
        _
    $region12: #{encoder_forward.9} parent=5 // pred_fallthru
      _
    %p99 = scmp.lt.s32.totalorder %s8, 2
    // Predicated region
    $region17: #{encoder_forward.9} parent=5 // pred_check
      %p100 = pneg %p99
    $region18: #{encoder_forward.9} parent=5 // pred_check_branch
      %102 = sbr.rel (%p100) target = $region20
    $region19: #{encoder_forward.9} parent=5 // pred_region
      // Predicated region
      $region21: #{encoder_forward.9} parent=19 // pred_check
        %p103 = pneg %p28
      $region22: #{encoder_forward.9} parent=19 // pred_check_branch
        %105 = sbr.rel (%p103) target = $region24
      $region23: #{encoder_forward.9} parent=19 // pred_region
        %s106 = smul.u32 2, %s8
        %p107 = scmp.lt.s32.totalorder %s106, 3
        %s108 = scalar_select %p107, %s106, 3
        %s109 = smul.addr %s108, 2
        %s110 = smul.addr %s109, 4
        %s111 = scalar_lea.vmem %s0, %s110
        %s112 = smul.u32 2, %s8
      $region24: #{encoder_forward.9} parent=19 // pred_fallthru
        _
    $region20: #{encoder_forward.9} parent=5 // pred_fallthru
      _
    %p113 = scmp.le.s32.totalorder 1, %s8
    %p114 = scmp.lt.s32.totalorder %s8, 3
    %p115 = pnand %p113, %p114
    %p116 = pneg %p115
    // Predicated region
    $region25: #{encoder_forward.9} parent=5 // pred_check
      _
    $region26: #{encoder_forward.9} parent=5 // pred_check_branch
      %118 = sbr.rel (%p115) target = $region28
    $region27: #{encoder_forward.9} parent=5 // pred_region
      %s119 = ssub.s32 %s8, 1
      %s120 = smul.u32 2, %s13
      %p121 = scmp.lt.s32.totalorder %s120, 3
      %s122 = scalar_select %p121, %s120, 3
      %s123 = smul.addr %s122, 2
      %s124 = smul.addr %s123, 4
      %s125 = scalar_lea.vmem %s0, %s124
      %p126 = pneg %p34
      %p127 = pneg %p31
      %p128 = pneg %p55
      %p129 = pneg %p52
      %p130 = pneg %p81
      %p131 = pneg %p78
      %p132 = scmp.lt.s32.totalorder %s13, 1
      %s133 = scalar_select %p132, %s13, 1
      %s134 = smul.addr %s133, 2
      %s135 = scalar_lea.vmem %s2, %s134
      %s136 = smul.u32 2, %s13
      %p137 = scmp.lt.s32.totalorder %s136, 3
      %s138 = scalar_select %p137, %s136, 3
      %s139 = smul.addr %s138, 2
      %s140 = smul.addr %s139, 4
      %s141 = scalar_lea.vmem %s0, %s140
      %s142 = smul.u32 2, %s13
      %p143 = scmp.lt.s32.totalorder %s13, 1
      %s144 = scalar_select %p143, %s13, 1
      %s145 = smul.addr %s144, 2
      %s146 = scalar_lea.vmem %s2, %s145
      %v147 = vld [vmem:[%s141] sm:$0xff]
      %v148 = vld [vmem:[%s141 + $0x8] sm:$0xff]
      %v149 = vld [vmem:[%s1] sm:$0xf]
      %v150 = vld [vmem:[%s1 + $0x4] sm:$0xf]
      %v151 = vld [vmem:[%s1 + $0x8] sm:$0xf]
      %v152 = vld [vmem:[%s1 + $0xc] sm:$0xf]
      %v153 = vld [vmem:[%s1 + $0x10] sm:$0xf]
      %v154 = vld [vmem:[%s1 + $0x14] sm:$0xf]
      %v155 = vld [vmem:[%s1 + $0x18] sm:$0xf]
      %v156 = vld [vmem:[%s1 + $0x1c] sm:$0xf]
      %v157 = vld [vmem:[%s1 + $0x20] sm:$0xf]
      %v158 = vld [vmem:[%s1 + $0x24] sm:$0xf]
      %v159 = vld [vmem:[%s1 + $0x28] sm:$0xf]
      %v160 = vld [vmem:[%s1 + $0x2c] sm:$0xf]
      %v161 = vld [vmem:[%s1 + $0x30] sm:$0xf]
      %v162 = vld [vmem:[%s1 + $0x34] sm:$0xf]
      %v163 = vld [vmem:[%s1 + $0x38] sm:$0xf]
      %v164 = vld [vmem:[%s1 + $0x3c] sm:$0xf]
      %v165 = vld [vmem:[%s1 + $0x40] sm:$0xf]
      %v166 = vld [vmem:[%s1 + $0x44] sm:$0xf]
      %v167 = vld [vmem:[%s1 + $0x48] sm:$0xf]
      %v168 = vld [vmem:[%s1 + $0x4c] sm:$0xf]
      %v169 = vld [vmem:[%s1 + $0x50] sm:$0xf]
      %v170 = vld [vmem:[%s1 + $0x54] sm:$0xf]
      %v171 = vld [vmem:[%s1 + $0x58] sm:$0xf]
      %v172 = vld [vmem:[%s1 + $0x5c] sm:$0xf]
      %v173 = vld [vmem:[%s1 + $0x60] sm:$0xf]
      %v174 = vld [vmem:[%s1 + $0x64] sm:$0xf]
      %v175 = vld [vmem:[%s1 + $0x68] sm:$0xf]
      %v176 = vld [vmem:[%s1 + $0x6c] sm:$0xf]
      %v177 = vld [vmem:[%s1 + $0x70] sm:$0xf]
      %v178 = vld [vmem:[%s1 + $0x74] sm:$0xf]
      %v179 = vld [vmem:[%s1 + $0x78] sm:$0xf]
      %v180 = vld [vmem:[%s1 + $0x7c] sm:$0xf]
      %v183 = vunpack.c.l.b16 %v147
      %v184 = vunpack.c.h.b16 %v147
      %v185 = vunpack.c.l.b16 %v148
      %v186 = vunpack.c.h.b16 %v148
      %v187 = vpack.c.b16 %v185, %v183
      %v188 = vpack.c.b16 %v186, %v184
      %v223 = vunpack.c.l.b16 %v149
      %v224 = vunpack.c.l.b16 %v150
      %v225 = vunpack.c.l.b16 %v151
      %v226 = vunpack.c.l.b16 %v152
      %v227 = vunpack.c.l.b16 %v153
      %v228 = vunpack.c.l.b16 %v154
      %v229 = vunpack.c.l.b16 %v155
      %v230 = vunpack.c.l.b16 %v156
      %v231 = vunpack.c.l.b16 %v157
      %v232 = vunpack.c.l.b16 %v158
      %v233 = vunpack.c.l.b16 %v159
      %v234 = vunpack.c.l.b16 %v160
      %v235 = vunpack.c.l.b16 %v161
      %v236 = vunpack.c.l.b16 %v162
      %v237 = vunpack.c.l.b16 %v163
      %v238 = vunpack.c.l.b16 %v164
      %v239 = vunpack.c.l.b16 %v165
      %v240 = vunpack.c.l.b16 %v166
      %v241 = vunpack.c.l.b16 %v167
      %v242 = vunpack.c.l.b16 %v168
      %v243 = vunpack.c.l.b16 %v169
      %v244 = vunpack.c.l.b16 %v170
      %v245 = vunpack.c.l.b16 %v171
      %v246 = vunpack.c.l.b16 %v172
      %v247 = vunpack.c.l.b16 %v173
      %v248 = vunpack.c.l.b16 %v174
      %v249 = vunpack.c.l.b16 %v175
      %v250 = vunpack.c.l.b16 %v176
      %v251 = vunpack.c.l.b16 %v177
      %v252 = vunpack.c.l.b16 %v178
      %v253 = vunpack.c.l.b16 %v179
      %v254 = vunpack.c.l.b16 %v180
      %v255 = vpack.c.b16 %v224, %v223
      %v256 = vpack.c.b16 %v226, %v225
      %v257 = vpack.c.b16 %v228, %v227
      %v258 = vpack.c.b16 %v230, %v229
      %v259 = vpack.c.b16 %v232, %v231
      %v260 = vpack.c.b16 %v234, %v233
      %v261 = vpack.c.b16 %v236, %v235
      %v262 = vpack.c.b16 %v238, %v237
      %v263 = vpack.c.b16 %v240, %v239
      %v264 = vpack.c.b16 %v242, %v241
      %v265 = vpack.c.b16 %v244, %v243
      %v266 = vpack.c.b16 %v246, %v245
      %v267 = vpack.c.b16 %v248, %v247
      %v268 = vpack.c.b16 %v250, %v249
      %v269 = vpack.c.b16 %v252, %v251
      %v270 = vpack.c.b16 %v254, %v253
      %287 = vmatpush.bf16.msra.mxu0 %v262
      %288 = vmatpush.bf16.msra.mxu0 %v261
      %289 = vmatpush.bf16.msra.mxu0 %v260
      %290 = vmatpush.bf16.msra.mxu0 %v259
      %291 = vmatpush.bf16.msra.mxu0 %v258
      %292 = vmatpush.bf16.msra.mxu0 %v257
      %293 = vmatpush.bf16.msra.mxu0 %v256
      %294 = vmatpush.bf16.msra.mxu0 %v255
      %295 = vmatmul.bf16.gmra.mxu0 %v187
      %v296 = vpop.f32.mrf.mxu0
      %v297 = vadd.f32 0.0, %v296
      %v298 = vpop.f32.mrf.mxu0
      %v299 = vadd.f32 0.0, %v298
      %300 = vdwg.mxu0
      %301 = vmatpush.bf16.msra.mxu0 %v270
      %302 = vmatpush.bf16.msra.mxu0 %v269
      %303 = vmatpush.bf16.msra.mxu0 %v268
      %304 = vmatpush.bf16.msra.mxu0 %v267
      %305 = vmatpush.bf16.msra.mxu0 %v266
      %306 = vmatpush.bf16.msra.mxu0 %v265
      %307 = vmatpush.bf16.msra.mxu0 %v264
      %308 = vmatpush.bf16.msra.mxu0 %v263
      %309 = vmatmul.bf16.gmra.mxu0 %v188
      %v310 = vpop.f32.mrf.mxu0
      %v311 = vadd.f32 %v297, %v310
      %v312 = vpop.f32.mrf.mxu0
      %v313 = vadd.f32 %v299, %v312
      %314 = vdwg.mxu0
      %v315 = vadd.f32 %v311, %v313
      %v316 = vrot.slane %v315, 4
      %v317 = vadd.f32 %v315, %v316
      %v318 = vrot.slane %v317, 2
      %v319 = vadd.f32 %v317, %v318
      %v320 = vrot.slane %v319, 1
      %v321 = vadd.f32 %v319, %v320
      %v322 = vmul.f32 %v311, %v311
      %v323 = vmul.f32 %v313, %v313
      %v324 = vadd.f32 %v322, %v323
      %v325 = vrot.slane %v324, 4
      %v326 = vadd.f32 %v324, %v325
      %v327 = vrot.slane %v326, 2
      %v328 = vadd.f32 %v326, %v327
      %v329 = vrot.slane %v328, 1
      %v330 = vadd.f32 %v328, %v329
      %v333 = vrot.slane %v330, 7
      %vm334 = vcmask 1040384
      %v335 = vsel %vm334, %v321, %v333
      %v337 = vlaneseq
      %vm338 = vcmp.ge.s32.totalorder %v337, 0
      %vm339 = vcmp.lt.s32.totalorder %v337, 256
      %vm340 = vmand %vm338, %vm339
      %341 = vst.msk [vmem:[%s146] sm:$0x3] %vm340, %v335
      %p342 = scmp.lt.s32.totalorder %s13, 1
      %s343 = scalar_select %p342, %s13, 1
      %s344 = smul.addr %s343, 2
      %s345 = scalar_lea.vmem %s2, %s344
      // Predicated region
      $region29: #{encoder_forward.9} parent=27 // pred_check
        %p346 = pneg %p78
      $region30: #{encoder_forward.9} parent=27 // pred_check_branch
        %348 = sbr.rel (%p346) target = $region32
      $region31: #{encoder_forward.9} parent=27 // pred_region
        _
      $region32: #{encoder_forward.9} parent=27 // pred_fallthru
        _
    $region28: #{encoder_forward.9} parent=5 // pred_fallthru
      _
    %p349 = scmp.le.s32.totalorder 2, %s8
    // Predicated region
    $region33: #{encoder_forward.9} parent=5 // pred_check
      %p350 = pneg %p349
    $region34: #{encoder_forward.9} parent=5 // pred_check_branch
      %352 = sbr.rel (%p350) target = $region36
    $region35: #{encoder_forward.9} parent=5 // pred_region
      %s353 = ssub.s32 %s8, 2
      // Predicated region
      $region37: #{encoder_forward.9} parent=35 // pred_check
        %p354 = pneg %p84
      $region38: #{encoder_forward.9} parent=35 // pred_check_branch
        %356 = sbr.rel (%p354) target = $region40
      $region39: #{encoder_forward.9} parent=35 // pred_region
        %p357 = scmp.lt.s32.totalorder %s14, 1
        %s358 = scalar_select %p357, %s14, 1
        %s359 = smul.addr %s358, 2
        %s360 = scalar_lea.vmem %s2, %s359
      $region40: #{encoder_forward.9} parent=35 // pred_fallthru
        _
    $region36: #{encoder_forward.9} parent=5 // pred_fallthru
      _
  $region6: #{encoder_forward.9} parent=0 // loop_footer
    %s12 = sadd.s32 1, %s8
  $region7: #{encoder_forward.9} parent=0 // loop_footer_branch
    %7 = sbr.rel target = $region3
  $region8: #{encoder_forward.9} parent=0 // loop_exit
    _

// kernel: encoder_forward.10
$region0: #{encoder_forward.10}
  #allocation0 [shape = 'u32[]', space=smem, size = 0x4, offset = 0x4, fixed_abs, tag = 'smem constant byte address 0x4 - core index']
  #allocation1 [shape = 'u32[72,128]{1,0:T(1,128)}', space=vmem, size = 0x9000, scoped, tag = 'internal scratch']
  %s0 = inlined_call_operand.vmem [shape: bf16[32,256], index: 0, kind: input, shape index: {}]
  %s1 = inlined_call_operand.vmem [shape: bf16[256,128], index: 1, kind: input, shape index: {}]
  %s2 = inlined_call_operand.vmem [shape: f32[1,128], index: 2, kind: input, shape index: {}]
  %s3 = inlined_call_operand.vmem [shape: f32[1,128], index: 3, kind: input, shape index: {}]
  %s4 = inlined_call_operand.vmem [shape: bf16[32,128], index: 4, kind: output, shape index: {}]
  %s5 = sld [smem:[#allocation0]]
  $region49: #{encoder_forward.10} parent=0
    _
  %s7 = ssub.s32 1, %s5
  %s8 = scalar_select 0, %s7, %s5
  loop: start=0, step=1, limit=4
  $region2: #{encoder_forward.10} parent=0 // loop_pre_header
    _
  $region3: #{encoder_forward.10} parent=0 // loop_header
    %s10 = sphi 0, %s14
    %p11 = scmp.ge.s32.totalorder %s10, 4
    %s20 = sphi 0, %s22
    %s23 = sphi 0, %s20
    %s24 = sphi 0, %s23
    %s40 = sphi 0, %s24
    %s44 = sphi 0, %s44
    %s46 = sphi 0, %s44
    %s47 = sphi 0, %s46
    %s61 = sphi 0, %s47
    %s65 = sphi 0, %s65
    %s67 = sphi 0, %s65
    %s68 = sphi 0, %s67
    %s82 = sphi 0, %s68
    %s86 = sphi 0, %s86
    %s88 = sphi 0, %s86
    %s89 = sphi 0, %s88
    %s103 = sphi 0, %s89
    %s109 = sphi 0, %s111
    %s112 = sphi 0, %s109
    %s113 = sphi 0, %s112
    %s129 = sphi 0, %s113
  $region4: #{encoder_forward.10} parent=0 // loop_header_branch
    %13 = sbr.rel (%p11) target = $region8
  $region5: #{encoder_forward.10} parent=0 // loop_body
    %s15 = ssub.s32 %s10, 1
    %s16 = ssub.s32 %s10, 2
    %s17 = sadd.s32 %s10, 1
    %s18 = ssub.s32 %s10, %s17
    %p19 = scmp.eq.s32.totalorder %s18, 0
    %s21 = sadd.s32 %s20, 1
    %s22 = scalar_select %p19, %s20, %s21
    %p25 = pneg %p19
    %p26 = scmp.eq.s32.totalorder %s10, 1
    %p27 = por %p25, %p26
    %p28 = scmp.ne.s32.totalorder %s20, %s23
    %p29 = scmp.eq.s32.totalorder %s10, 0
    %p30 = por %p28, %p29
    %p31 = scmp.ne.s32.totalorder %s20, %s23
    %p32 = scmp.eq.s32.totalorder %s15, 1
    %p33 = por %p31, %p32
    %p34 = scmp.ne.s32.totalorder %s23, %s24
    %p35 = scmp.eq.s32.totalorder %s15, 0
    %p36 = por %p34, %p35
    %p37 = scmp.ne.s32.totalorder %s23, %s24
    %p38 = scmp.eq.s32.totalorder %s16, 1
    %p39 = por %p37, %p38
    %p41 = scmp.ne.s32.totalorder %s24, %s40
    %p42 = scmp.eq.s32.totalorder %s16, 0
    %p43 = por %p41, %p42
    %s45 = sadd.s32 %s44, 1
    %p48 = scmp.eq.s32.totalorder %s10, 1
    %p49 = scmp.ne.s32.totalorder %s44, %s46
    %p50 = scmp.eq.s32.totalorder %s10, 0
    %p51 = por %p49, %p50
    %p52 = scmp.ne.s32.totalorder %s44, %s46
    %p53 = scmp.eq.s32.totalorder %s15, 1
    %p54 = por %p52, %p53
    %p55 = scmp.ne.s32.totalorder %s46, %s47
    %p56 = scmp.eq.s32.totalorder %s15, 0
    %p57 = por %p55, %p56
    %p58 = scmp.ne.s32.totalorder %s46, %s47
    %p59 = scmp.eq.s32.totalorder %s16, 1
    %p60 = por %p58, %p59
    %p62 = scmp.ne.s32.totalorder %s47, %s61
    %p63 = scmp.eq.s32.totalorder %s16, 0
    %p64 = por %p62, %p63
    %s66 = sadd.s32 %s65, 1
    %p69 = scmp.eq.s32.totalorder %s10, 1
    %p70 = scmp.ne.s32.totalorder %s65, %s67
    %p71 = scmp.eq.s32.totalorder %s10, 0
    %p72 = por %p70, %p71
    %p73 = scmp.ne.s32.totalorder %s65, %s67
    %p74 = scmp.eq.s32.totalorder %s15, 1
    %p75 = por %p73, %p74
    %p76 = scmp.ne.s32.totalorder %s67, %s68
    %p77 = scmp.eq.s32.totalorder %s15, 0
    %p78 = por %p76, %p77
    %p79 = scmp.ne.s32.totalorder %s67, %s68
    %p80 = scmp.eq.s32.totalorder %s16, 1
    %p81 = por %p79, %p80
    %p83 = scmp.ne.s32.totalorder %s68, %s82
    %p84 = scmp.eq.s32.totalorder %s16, 0
    %p85 = por %p83, %p84
    %s87 = sadd.s32 %s86, 1
    %p90 = scmp.eq.s32.totalorder %s10, 1
    %p91 = scmp.ne.s32.totalorder %s86, %s88
    %p92 = scmp.eq.s32.totalorder %s10, 0
    %p93 = por %p91, %p92
    %p94 = scmp.ne.s32.totalorder %s86, %s88
    %p95 = scmp.eq.s32.totalorder %s15, 1
    %p96 = por %p94, %p95
    %p97 = scmp.ne.s32.totalorder %s88, %s89
    %p98 = scmp.eq.s32.totalorder %s15, 0
    %p99 = por %p97, %p98
    %p100 = scmp.ne.s32.totalorder %s88, %s89
    %p101 = scmp.eq.s32.totalorder %s16, 1
    %p102 = por %p100, %p101
    %p104 = scmp.ne.s32.totalorder %s89, %s103
    %p105 = scmp.eq.s32.totalorder %s16, 0
    %p106 = por %p104, %p105
    %s107 = ssub.s32 %s10, %s17
    %p108 = scmp.eq.s32.totalorder %s107, 0
    %s110 = sadd.s32 %s109, 1
    %s111 = scalar_select %p108, %s109, %s110
    %p114 = pneg %p108
    %p115 = scmp.eq.s32.totalorder %s10, 1
    %p116 = por %p114, %p115
    %p117 = scmp.ne.s32.totalorder %s109, %s112
    %p118 = scmp.eq.s32.totalorder %s10, 0
    %p119 = por %p117, %p118
    %p120 = scmp.ne.s32.totalorder %s109, %s112
    %p121 = scmp.eq.s32.totalorder %s15, 1
    %p122 = por %p120, %p121
    %p123 = scmp.ne.s32.totalorder %s112, %s113
    %p124 = scmp.eq.s32.totalorder %s15, 0
    %p125 = por %p123, %p124
    %p126 = scmp.ne.s32.totalorder %s112, %s113
    %p127 = scmp.eq.s32.totalorder %s16, 1
    %p128 = por %p126, %p127
    %p130 = scmp.ne.s32.totalorder %s113, %s129
    %p131 = scmp.eq.s32.totalorder %s16, 0
    %p132 = por %p130, %p131
    %p133 = scmp.le.s32.totalorder 1, %s10
    %p134 = scmp.lt.s32.totalorder %s10, 3
    %p135 = pnand %p133, %p134
    %p136 = pneg %p135
    // Predicated region
    $region9: #{encoder_forward.10} parent=5 // pred_check
      _
    $region10: #{encoder_forward.10} parent=5 // pred_check_branch
      %138 = sbr.rel (%p135) target = $region12
    $region11: #{encoder_forward.10} parent=5 // pred_region
      %s139 = ssub.s32 %s10, 1
      // Predicated region
      $region13: #{encoder_forward.10} parent=11 // pred_check
        %p140 = pneg %p57
      $region14: #{encoder_forward.10} parent=11 // pred_check_branch
        %142 = sbr.rel (%p140) target = $region16
      $region15: #{encoder_forward.10} parent=11 // pred_region
        _
      $region16: #{encoder_forward.10} parent=11 // pred_fallthru
        _
      // Predicated region
      $region17: #{encoder_forward.10} parent=11 // pred_check
        %p143 = pneg %p78
      $region18: #{encoder_forward.10} parent=11 // pred_check_branch
        %145 = sbr.rel (%p143) target = $region20
      $region19: #{encoder_forward.10} parent=11 // pred_region
        _
      $region20: #{encoder_forward.10} parent=11 // pred_fallthru
        _
      // Predicated region
      $region21: #{encoder_forward.10} parent=11 // pred_check
        %p146 = pneg %p99
      $region22: #{encoder_forward.10} parent=11 // pred_check_branch
        %148 = sbr.rel (%p146) target = $region24
      $region23: #{encoder_forward.10} parent=11 // pred_region
        _
      $region24: #{encoder_forward.10} parent=11 // pred_fallthru
        _
    $region12: #{encoder_forward.10} parent=5 // pred_fallthru
      _
    %p149 = scmp.lt.s32.totalorder %s10, 2
    // Predicated region
    $region25: #{encoder_forward.10} parent=5 // pred_check
      %p150 = pneg %p149
    $region26: #{encoder_forward.10} parent=5 // pred_check_branch
      %152 = sbr.rel (%p150) target = $region28
    $region27: #{encoder_forward.10} parent=5 // pred_region
      // Predicated region
      $region29: #{encoder_forward.10} parent=27 // pred_check
        %p153 = pneg %p30
      $region30: #{encoder_forward.10} parent=27 // pred_check_branch
        %155 = sbr.rel (%p153) target = $region32
      $region31: #{encoder_forward.10} parent=27 // pred_region
        %s156 = smul.u32 2, %s10
        %p157 = scmp.lt.s32.totalorder %s156, 3
        %s158 = scalar_select %p157, %s156, 3
        %s159 = smul.addr %s158, 2
        %s160 = smul.addr %s159, 4
        %s161 = scalar_lea.vmem %s0, %s160
        %s162 = smul.u32 2, %s10
      $region32: #{encoder_forward.10} parent=27 // pred_fallthru
        _
    $region28: #{encoder_forward.10} parent=5 // pred_fallthru
      _
    %p163 = scmp.le.s32.totalorder 1, %s10
    %p164 = scmp.lt.s32.totalorder %s10, 3
    %p165 = pnand %p163, %p164
    %p166 = pneg %p165
    // Predicated region
    $region33: #{encoder_forward.10} parent=5 // pred_check
      _
    $region34: #{encoder_forward.10} parent=5 // pred_check_branch
      %168 = sbr.rel (%p165) target = $region36
    $region35: #{encoder_forward.10} parent=5 // pred_region
      %s169 = ssub.s32 %s10, 1
      %s170 = smul.u32 2, %s15
      %p171 = scmp.lt.s32.totalorder %s170, 3
      %s172 = scalar_select %p171, %s170, 3
      %s173 = smul.addr %s172, 2
      %s174 = smul.addr %s173, 4
      %s175 = scalar_lea.vmem %s0, %s174
      %p176 = pneg %p36
      %p177 = pneg %p33
      %p178 = pneg %p57
      %p179 = pneg %p54
      %p180 = pneg %p78
      %p181 = pneg %p75
      %p182 = pneg %p99
      %p183 = pneg %p96
      %p184 = pneg %p125
      %p185 = pneg %p122
      %s186 = smul.u32 2, %s15
      %p187 = scmp.lt.s32.totalorder %s186, 3
      %s188 = scalar_select %p187, %s186, 3
      %s189 = smul.addr %s188, 4
      %s190 = scalar_lea.vmem %s4, %s189
      %s191 = smul.u32 2, %s15
      %p192 = scmp.lt.s32.totalorder %s191, 3
      %s193 = scalar_select %p192, %s191, 3
      %s194 = smul.addr %s193, 2
      %s195 = smul.addr %s194, 4
      %s196 = scalar_lea.vmem %s0, %s195
      %s197 = smul.u32 2, %s15
      %s198 = smul.u32 2, %s15
      %p199 = scmp.lt.s32.totalorder %s198, 3
      %s200 = scalar_select %p199, %s198, 3
      %s201 = smul.addr %s200, 4
      %s202 = scalar_lea.vmem %s4, %s201
      %s203 = smul.u32 2, %s15
      %v204 = vld [vmem:[%s196] sm:$0xff]
      %v205 = vld [vmem:[%s196 + $0x8] sm:$0xff]
      %v206 = vld [vmem:[%s1] sm:$0xf]
      %v207 = vld [vmem:[%s1 + $0x4] sm:$0xf]
      %v208 = vld [vmem:[%s1 + $0x8] sm:$0xf]
      %v209 = vld [vmem:[%s1 + $0xc] sm:$0xf]
      %v210 = vld [vmem:[%s1 + $0x10] sm:$0xf]
      %v211 = vld [vmem:[%s1 + $0x14] sm:$0xf]
      %v212 = vld [vmem:[%s1 + $0x18] sm:$0xf]
      %v213 = vld [vmem:[%s1 + $0x1c] sm:$0xf]
      %v214 = vld [vmem:[%s1 + $0x20] sm:$0xf]
      %v215 = vld [vmem:[%s1 + $0x24] sm:$0xf]
      %v216 = vld [vmem:[%s1 + $0x28] sm:$0xf]
      %v217 = vld [vmem:[%s1 + $0x2c] sm:$0xf]
      %v218 = vld [vmem:[%s1 + $0x30] sm:$0xf]
      %v219 = vld [vmem:[%s1 + $0x34] sm:$0xf]
      %v220 = vld [vmem:[%s1 + $0x38] sm:$0xf]
      %v221 = vld [vmem:[%s1 + $0x3c] sm:$0xf]
      %v222 = vld [vmem:[%s1 + $0x40] sm:$0xf]
      %v223 = vld [vmem:[%s1 + $0x44] sm:$0xf]
      %v224 = vld [vmem:[%s1 + $0x48] sm:$0xf]
      %v225 = vld [vmem:[%s1 + $0x4c] sm:$0xf]
      %v226 = vld [vmem:[%s1 + $0x50] sm:$0xf]
      %v227 = vld [vmem:[%s1 + $0x54] sm:$0xf]
      %v228 = vld [vmem:[%s1 + $0x58] sm:$0xf]
      %v229 = vld [vmem:[%s1 + $0x5c] sm:$0xf]
      %v230 = vld [vmem:[%s1 + $0x60] sm:$0xf]
      %v231 = vld [vmem:[%s1 + $0x64] sm:$0xf]
      %v232 = vld [vmem:[%s1 + $0x68] sm:$0xf]
      %v233 = vld [vmem:[%s1 + $0x6c] sm:$0xf]
      %v234 = vld [vmem:[%s1 + $0x70] sm:$0xf]
      %v235 = vld [vmem:[%s1 + $0x74] sm:$0xf]
      %v236 = vld [vmem:[%s1 + $0x78] sm:$0xf]
      %v237 = vld [vmem:[%s1 + $0x7c] sm:$0xf]
      %v240 = vunpack.c.l.b16 %v204
      %v241 = vunpack.c.h.b16 %v204
      %v242 = vunpack.c.l.b16 %v205
      %v243 = vunpack.c.h.b16 %v205
      %v244 = vpack.c.b16 %v242, %v240
      %v245 = vpack.c.b16 %v243, %v241
      %v280 = vunpack.c.l.b16 %v206
      %v281 = vunpack.c.l.b16 %v207
      %v282 = vunpack.c.l.b16 %v208
      %v283 = vunpack.c.l.b16 %v209
      %v284 = vunpack.c.l.b16 %v210
      %v285 = vunpack.c.l.b16 %v211
      %v286 = vunpack.c.l.b16 %v212
      %v287 = vunpack.c.l.b16 %v213
      %v288 = vunpack.c.l.b16 %v214
      %v289 = vunpack.c.l.b16 %v215
      %v290 = vunpack.c.l.b16 %v216
      %v291 = vunpack.c.l.b16 %v217
      %v292 = vunpack.c.l.b16 %v218
      %v293 = vunpack.c.l.b16 %v219
      %v294 = vunpack.c.l.b16 %v220
      %v295 = vunpack.c.l.b16 %v221
      %v296 = vunpack.c.l.b16 %v222
      %v297 = vunpack.c.l.b16 %v223
      %v298 = vunpack.c.l.b16 %v224
      %v299 = vunpack.c.l.b16 %v225
      %v300 = vunpack.c.l.b16 %v226
      %v301 = vunpack.c.l.b16 %v227
      %v302 = vunpack.c.l.b16 %v228
      %v303 = vunpack.c.l.b16 %v229
      %v304 = vunpack.c.l.b16 %v230
      %v305 = vunpack.c.l.b16 %v231
      %v306 = vunpack.c.l.b16 %v232
      %v307 = vunpack.c.l.b16 %v233
      %v308 = vunpack.c.l.b16 %v234
      %v309 = vunpack.c.l.b16 %v235
      %v310 = vunpack.c.l.b16 %v236
      %v311 = vunpack.c.l.b16 %v237
      %v312 = vpack.c.b16 %v281, %v280
      %v313 = vpack.c.b16 %v283, %v282
      %v314 = vpack.c.b16 %v285, %v284
      %v315 = vpack.c.b16 %v287, %v286
      %v316 = vpack.c.b16 %v289, %v288
      %v317 = vpack.c.b16 %v291, %v290
      %v318 = vpack.c.b16 %v293, %v292
      %v319 = vpack.c.b16 %v295, %v294
      %v320 = vpack.c.b16 %v297, %v296
      %v321 = vpack.c.b16 %v299, %v298
      %v322 = vpack.c.b16 %v301, %v300
      %v323 = vpack.c.b16 %v303, %v302
      %v324 = vpack.c.b16 %v305, %v304
      %v325 = vpack.c.b16 %v307, %v306
      %v326 = vpack.c.b16 %v309, %v308
      %v327 = vpack.c.b16 %v311, %v310
      %344 = vmatpush.bf16.msra.mxu0 %v319
      %345 = vmatpush.bf16.msra.mxu0 %v318
      %346 = vmatpush.bf16.msra.mxu0 %v317
      %347 = vmatpush.bf16.msra.mxu0 %v316
      %348 = vmatpush.bf16.msra.mxu0 %v315
      %349 = vmatpush.bf16.msra.mxu0 %v314
      %350 = vmatpush.bf16.msra.mxu0 %v313
      %351 = vmatpush.bf16.msra.mxu0 %v312
      %352 = vmatmul.bf16.gmra.mxu0 %v244
      %v353 = vpop.f32.mrf.mxu0
      %v354 = vadd.f32 0.0, %v353
      %v355 = vpop.f32.mrf.mxu0
      %v356 = vadd.f32 0.0, %v355
      %357 = vdwg.mxu0
      %358 = vmatpush.bf16.msra.mxu0 %v327
      %359 = vmatpush.bf16.msra.mxu0 %v326
      %360 = vmatpush.bf16.msra.mxu0 %v325
      %361 = vmatpush.bf16.msra.mxu0 %v324
      %362 = vmatpush.bf16.msra.mxu0 %v323
      %363 = vmatpush.bf16.msra.mxu0 %v322
      %364 = vmatpush.bf16.msra.mxu0 %v321
      %365 = vmatpush.bf16.msra.mxu0 %v320
      %366 = vmatmul.bf16.gmra.mxu0 %v245
      %v367 = vpop.f32.mrf.mxu0
      %v368 = vadd.f32 %v354, %v367
      %v369 = vpop.f32.mrf.mxu0
      %v370 = vadd.f32 %v356, %v369
      %371 = vdwg.mxu0
      %v372 = vld [vmem:[%s2] sm:$0x1]
      %v374 = vperm.slane %v372, 0
      %v376 = vmul.f32 %v368, %v374
      %v377 = vmul.f32 %v370, %v374
      %v378 = vld [vmem:[%s3] sm:$0x1]
      %v380 = vperm.slane %v378, 0
      %v382 = vadd.f32 %v376, %v380
      %v383 = vadd.f32 %v377, %v380
      %v384 = vmax.f32 %v382, 0.0
      %v385 = vmax.f32 %v383, 0.0
      %v386 = vpack.c.bf16 %v384, %v384
      %v387 = vpack.c.bf16 %v385, %v385
      %388 = vst [vmem:[%s202] sm:$0xf] %v386
      %389 = vst [vmem:[%s202 + $0x4] sm:$0xf] %v387
      %s390 = smul.u32 2, %s15
      %p391 = scmp.lt.s32.totalorder %s390, 3
      %s392 = scalar_select %p391, %s390, 3
      %s393 = smul.addr %s392, 4
      %s394 = scalar_lea.vmem %s4, %s393
      // Predicated region
      $region37: #{encoder_forward.10} parent=35 // pred_check
        %p395 = pneg %p122
      $region38: #{encoder_forward.10} parent=35 // pred_check_branch
        %397 = sbr.rel (%p395) target = $region40
      $region39: #{encoder_forward.10} parent=35 // pred_region
        %s398 = smul.u32 2, %s15
      $region40: #{encoder_forward.10} parent=35 // pred_fallthru
        _
    $region36: #{encoder_forward.10} parent=5 // pred_fallthru
      _
    %p399 = scmp.le.s32.totalorder 2, %s10
    // Predicated region
    $region41: #{encoder_forward.10} parent=5 // pred_check
      %p400 = pneg %p399
    $region42: #{encoder_forward.10} parent=5 // pred_check_branch
      %402 = sbr.rel (%p400) target = $region44
    $region43: #{encoder_forward.10} parent=5 // pred_region
      %s403 = ssub.s32 %s10, 2
      // Predicated region
      $region45: #{encoder_forward.10} parent=43 // pred_check
        %p404 = pneg %p128
      $region46: #{encoder_forward.10} parent=43 // pred_check_branch
        %406 = sbr.rel (%p404) target = $region48
      $region47: #{encoder_forward.10} parent=43 // pred_region
        %s407 = smul.u32 2, %s16
        %p408 = scmp.lt.s32.totalorder %s407, 3
        %s409 = scalar_select %p408, %s407, 3
        %s410 = smul.addr %s409, 4
        %s411 = scalar_lea.vmem %s4, %s410
      $region48: #{encoder_forward.10} parent=43 // pred_fallthru
        _
    $region44: #{encoder_forward.10} parent=5 // pred_fallthru
      _
  $region6: #{encoder_forward.10} parent=0 // loop_footer
    %s14 = sadd.s32 1, %s10
  $region7: #{encoder_forward.10} parent=0 // loop_footer_branch
    %9 = sbr.rel target = $region3
  $region8: #{encoder_forward.10} parent=0 // loop_exit
    _

// kernel: encoder_forward.12
$region0: #{encoder_forward.12}
  #allocation0 [shape = 'u32[]', space=smem, size = 0x4, offset = 0x4, fixed_abs, tag = 'smem constant byte address 0x4 - core index']
  #allocation1 [shape = 'u32[72,128]{1,0:T(1,128)}', space=vmem, size = 0x9000, scoped, tag = 'internal scratch']
  %s0 = inlined_call_operand.vmem [shape: bf16[8,128], index: 0, kind: input, shape index: {}]
  %s1 = inlined_call_operand.vmem [shape: f32[1,128], index: 1, kind: input, shape index: {}]
  %s2 = inlined_call_operand.vmem [shape: f32[1,128], index: 2, kind: input, shape index: {}]
  %s3 = inlined_call_operand.vmem [shape: bf16[8,128], index: 3, kind: output, shape index: {}]
  %s4 = sld [smem:[#allocation0]]
  $region22: #{encoder_forward.12} parent=0
    _
  %s6 = ssub.s32 1, %s4
  %s7 = scalar_select 0, %s6, %s4
  // Predicated region
  $region2: #{encoder_forward.12} parent=0 // pred_check
    _
  $region3: #{encoder_forward.12} parent=0 // pred_check_branch
    %9 = sbr.rel (0) target = $region5
  $region4: #{encoder_forward.12} parent=0 // pred_region
    _
  $region5: #{encoder_forward.12} parent=0 // pred_fallthru
    _
  // Predicated region
  $region6: #{encoder_forward.12} parent=0 // pred_check
    _
  $region7: #{encoder_forward.12} parent=0 // pred_check_branch
    %11 = sbr.rel (0) target = $region9
  $region8: #{encoder_forward.12} parent=0 // pred_region
    _
  $region9: #{encoder_forward.12} parent=0 // pred_fallthru
    _
  // Predicated region
  $region10: #{encoder_forward.12} parent=0 // pred_check
    _
  $region11: #{encoder_forward.12} parent=0 // pred_check_branch
    %13 = sbr.rel (0) target = $region13
  $region12: #{encoder_forward.12} parent=0 // pred_region
    _
  $region13: #{encoder_forward.12} parent=0 // pred_fallthru
    _
  %v14 = vld [vmem:[%s0] sm:$0xf]
  %v15 = vunpack.c.l.bf16 %v14
  %v16 = vld [vmem:[%s1] sm:$0x1]
  %v18 = vperm.slane %v16, 0
  %v20 = vmul.f32 %v15, %v18
  %v21 = vld [vmem:[%s2] sm:$0x1]
  %v23 = vperm.slane %v21, 0
  %v25 = vadd.f32 %v20, %v23
  %v26 = vmax.f32 %v25, 0.0
  %v27 = vpack.c.bf16 %v26, %v26
  %28 = vst [vmem:[%s3] sm:$0xf] %v27
  // Predicated region
  $region14: #{encoder_forward.12} parent=0 // pred_check
    _
  $region15: #{encoder_forward.12} parent=0 // pred_check_branch
    %30 = sbr.rel (0) target = $region17
  $region16: #{encoder_forward.12} parent=0 // pred_region
    _
  $region17: #{encoder_forward.12} parent=0 // pred_fallthru
    _
  // Predicated region
  $region18: #{encoder_forward.12} parent=0 // pred_check
    _
  $region19: #{encoder_forward.12} parent=0 // pred_check_branch
    %32 = sbr.rel (0) target = $region21
  $region20: #{encoder_forward.12} parent=0 // pred_region
    _
  $region21: #{encoder_forward.12} parent=0 // pred_fallthru
    _

// kernel: encoder_forward.11
$region0: #{encoder_forward.11}
  #allocation0 [shape = 'u32[]', space=smem, size = 0x4, offset = 0x4, fixed_abs, tag = 'smem constant byte address 0x4 - core index']
  #allocation1 [shape = 'u32[72,128]{1,0:T(1,128)}', space=vmem, size = 0x9000, scoped, tag = 'internal scratch']
  %s0 = inlined_call_operand.vmem [shape: bf16[8,512], index: 0, kind: input, shape index: {}]
  %s1 = inlined_call_operand.vmem [shape: bf16[512,128], index: 1, kind: input, shape index: {}]
  %s2 = inlined_call_operand.vmem [shape: bf16[8,128], index: 2, kind: output, shape index: {0}]
  %s3 = inlined_call_operand.vmem [shape: f32[1,1,256], index: 3, kind: output, shape index: {1}]
  %4 = xla_tuple %s2, %s3
  %s5 = sld [smem:[#allocation0]]
  $region26: #{encoder_forward.11} parent=0
    _
  %s7 = ssub.s32 1, %s5
  %s8 = scalar_select 0, %s7, %s5
  // Predicated region
  $region2: #{encoder_forward.11} parent=0 // pred_check
    _
  $region3: #{encoder_forward.11} parent=0 // pred_check_branch
    %10 = sbr.rel (0) target = $region5
  $region4: #{encoder_forward.11} parent=0 // pred_region
    _
  $region5: #{encoder_forward.11} parent=0 // pred_fallthru
    _
  // Predicated region
  $region6: #{encoder_forward.11} parent=0 // pred_check
    _
  $region7: #{encoder_forward.11} parent=0 // pred_check_branch
    %12 = sbr.rel (0) target = $region9
  $region8: #{encoder_forward.11} parent=0 // pred_region
    _
  $region9: #{encoder_forward.11} parent=0 // pred_fallthru
    _
  %v13 = vld [vmem:[%s0] sm:$0xff]
  %v14 = vld [vmem:[%s0 + $0x8] sm:$0xff]
  %v15 = vld [vmem:[%s1] sm:$0xf]
  %v16 = vld [vmem:[%s1 + $0x4] sm:$0xf]
  %v17 = vld [vmem:[%s1 + $0x8] sm:$0xf]
  %v18 = vld [vmem:[%s1 + $0xc] sm:$0xf]
  %v19 = vld [vmem:[%s1 + $0x10] sm:$0xf]
  %v20 = vld [vmem:[%s1 + $0x14] sm:$0xf]
  %v21 = vld [vmem:[%s1 + $0x18] sm:$0xf]
  %v22 = vld [vmem:[%s1 + $0x1c] sm:$0xf]
  %v23 = vld [vmem:[%s1 + $0x20] sm:$0xf]
  %v24 = vld [vmem:[%s1 + $0x24] sm:$0xf]
  %v25 = vld [vmem:[%s1 + $0x28] sm:$0xf]
  %v26 = vld [vmem:[%s1 + $0x2c] sm:$0xf]
  %v27 = vld [vmem:[%s1 + $0x30] sm:$0xf]
  %v28 = vld [vmem:[%s1 + $0x34] sm:$0xf]
  %v29 = vld [vmem:[%s1 + $0x38] sm:$0xf]
  %v30 = vld [vmem:[%s1 + $0x3c] sm:$0xf]
  %v31 = vld [vmem:[%s1 + $0x40] sm:$0xf]
  %v32 = vld [vmem:[%s1 + $0x44] sm:$0xf]
  %v33 = vld [vmem:[%s1 + $0x48] sm:$0xf]
  %v34 = vld [vmem:[%s1 + $0x4c] sm:$0xf]
  %v35 = vld [vmem:[%s1 + $0x50] sm:$0xf]
  %v36 = vld [vmem:[%s1 + $0x54] sm:$0xf]
  %v37 = vld [vmem:[%s1 + $0x58] sm:$0xf]
  %v38 = vld [vmem:[%s1 + $0x5c] sm:$0xf]
  %v39 = vld [vmem:[%s1 + $0x60] sm:$0xf]
  %v40 = vld [vmem:[%s1 + $0x64] sm:$0xf]
  %v41 = vld [vmem:[%s1 + $0x68] sm:$0xf]
  %v42 = vld [vmem:[%s1 + $0x6c] sm:$0xf]
  %v43 = vld [vmem:[%s1 + $0x70] sm:$0xf]
  %v44 = vld [vmem:[%s1 + $0x74] sm:$0xf]
  %v45 = vld [vmem:[%s1 + $0x78] sm:$0xf]
  %v46 = vld [vmem:[%s1 + $0x7c] sm:$0xf]
  %v47 = vld [vmem:[%s1 + $0x80] sm:$0xf]
  %v48 = vld [vmem:[%s1 + $0x84] sm:$0xf]
  %v49 = vld [vmem:[%s1 + $0x88] sm:$0xf]
  %v50 = vld [vmem:[%s1 + $0x8c] sm:$0xf]
  %v51 = vld [vmem:[%s1 + $0x90] sm:$0xf]
  %v52 = vld [vmem:[%s1 + $0x94] sm:$0xf]
  %v53 = vld [vmem:[%s1 + $0x98] sm:$0xf]
  %v54 = vld [vmem:[%s1 + $0x9c] sm:$0xf]
  %v55 = vld [vmem:[%s1 + $0xa0] sm:$0xf]
  %v56 = vld [vmem:[%s1 + $0xa4] sm:$0xf]
  %v57 = vld [vmem:[%s1 + $0xa8] sm:$0xf]
  %v58 = vld [vmem:[%s1 + $0xac] sm:$0xf]
  %v59 = vld [vmem:[%s1 + $0xb0] sm:$0xf]
  %v60 = vld [vmem:[%s1 + $0xb4] sm:$0xf]
  %v61 = vld [vmem:[%s1 + $0xb8] sm:$0xf]
  %v62 = vld [vmem:[%s1 + $0xbc] sm:$0xf]
  %v63 = vld [vmem:[%s1 + $0xc0] sm:$0xf]
  %v64 = vld [vmem:[%s1 + $0xc4] sm:$0xf]
  %v65 = vld [vmem:[%s1 + $0xc8] sm:$0xf]
  %v66 = vld [vmem:[%s1 + $0xcc] sm:$0xf]
  %v67 = vld [vmem:[%s1 + $0xd0] sm:$0xf]
  %v68 = vld [vmem:[%s1 + $0xd4] sm:$0xf]
  %v69 = vld [vmem:[%s1 + $0xd8] sm:$0xf]
  %v70 = vld [vmem:[%s1 + $0xdc] sm:$0xf]
  %v71 = vld [vmem:[%s1 + $0xe0] sm:$0xf]
  %v72 = vld [vmem:[%s1 + $0xe4] sm:$0xf]
  %v73 = vld [vmem:[%s1 + $0xe8] sm:$0xf]
  %v74 = vld [vmem:[%s1 + $0xec] sm:$0xf]
  %v75 = vld [vmem:[%s1 + $0xf0] sm:$0xf]
  %v76 = vld [vmem:[%s1 + $0xf4] sm:$0xf]
  %v77 = vld [vmem:[%s1 + $0xf8] sm:$0xf]
  %v78 = vld [vmem:[%s1 + $0xfc] sm:$0xf]
  %v81 = vunpack.c.l.b16 %v13
  %v82 = vunpack.c.h.b16 %v13
  %v83 = vunpack.c.l.b16 %v14
  %v84 = vunpack.c.h.b16 %v14
  %v85 = vpack.c.b16 %v81, %v81
  %v86 = vpack.c.b16 %v82, %v82
  %v87 = vpack.c.b16 %v83, %v83
  %v88 = vpack.c.b16 %v84, %v84
  %v157 = vunpack.c.l.b16 %v15
  %v158 = vunpack.c.l.b16 %v16
  %v159 = vunpack.c.l.b16 %v17
  %v160 = vunpack.c.l.b16 %v18
  %v161 = vunpack.c.l.b16 %v19
  %v162 = vunpack.c.l.b16 %v20
  %v163 = vunpack.c.l.b16 %v21
  %v164 = vunpack.c.l.b16 %v22
  %v165 = vunpack.c.l.b16 %v23
  %v166 = vunpack.c.l.b16 %v24
  %v167 = vunpack.c.l.b16 %v25
  %v168 = vunpack.c.l.b16 %v26
  %v169 = vunpack.c.l.b16 %v27
  %v170 = vunpack.c.l.b16 %v28
  %v171 = vunpack.c.l.b16 %v29
  %v172 = vunpack.c.l.b16 %v30
  %v173 = vunpack.c.l.b16 %v31
  %v174 = vunpack.c.l.b16 %v32
  %v175 = vunpack.c.l.b16 %v33
  %v176 = vunpack.c.l.b16 %v34
  %v177 = vunpack.c.l.b16 %v35
  %v178 = vunpack.c.l.b16 %v36
  %v179 = vunpack.c.l.b16 %v37
  %v180 = vunpack.c.l.b16 %v38
  %v181 = vunpack.c.l.b16 %v39
  %v182 = vunpack.c.l.b16 %v40
  %v183 = vunpack.c.l.b16 %v41
  %v184 = vunpack.c.l.b16 %v42
  %v185 = vunpack.c.l.b16 %v43
  %v186 = vunpack.c.l.b16 %v44
  %v187 = vunpack.c.l.b16 %v45
  %v188 = vunpack.c.l.b16 %v46
  %v189 = vunpack.c.l.b16 %v47
  %v190 = vunpack.c.l.b16 %v48
  %v191 = vunpack.c.l.b16 %v49
  %v192 = vunpack.c.l.b16 %v50
  %v193 = vunpack.c.l.b16 %v51
  %v194 = vunpack.c.l.b16 %v52
  %v195 = vunpack.c.l.b16 %v53
  %v196 = vunpack.c.l.b16 %v54
  %v197 = vunpack.c.l.b16 %v55
  %v198 = vunpack.c.l.b16 %v56
  %v199 = vunpack.c.l.b16 %v57
  %v200 = vunpack.c.l.b16 %v58
  %v201 = vunpack.c.l.b16 %v59
  %v202 = vunpack.c.l.b16 %v60
  %v203 = vunpack.c.l.b16 %v61
  %v204 = vunpack.c.l.b16 %v62
  %v205 = vunpack.c.l.b16 %v63
  %v206 = vunpack.c.l.b16 %v64
  %v207 = vunpack.c.l.b16 %v65
  %v208 = vunpack.c.l.b16 %v66
  %v209 = vunpack.c.l.b16 %v67
  %v210 = vunpack.c.l.b16 %v68
  %v211 = vunpack.c.l.b16 %v69
  %v212 = vunpack.c.l.b16 %v70
  %v213 = vunpack.c.l.b16 %v71
  %v214 = vunpack.c.l.b16 %v72
  %v215 = vunpack.c.l.b16 %v73
  %v216 = vunpack.c.l.b16 %v74
  %v217 = vunpack.c.l.b16 %v75
  %v218 = vunpack.c.l.b16 %v76
  %v219 = vunpack.c.l.b16 %v77
  %v220 = vunpack.c.l.b16 %v78
  %v221 = vpack.c.b16 %v158, %v157
  %v222 = vpack.c.b16 %v160, %v159
  %v223 = vpack.c.b16 %v162, %v161
  %v224 = vpack.c.b16 %v164, %v163
  %v225 = vpack.c.b16 %v166, %v165
  %v226 = vpack.c.b16 %v168, %v167
  %v227 = vpack.c.b16 %v170, %v169
  %v228 = vpack.c.b16 %v172, %v171
  %v229 = vpack.c.b16 %v174, %v173
  %v230 = vpack.c.b16 %v176, %v175
  %v231 = vpack.c.b16 %v178, %v177
  %v232 = vpack.c.b16 %v180, %v179
  %v233 = vpack.c.b16 %v182, %v181
  %v234 = vpack.c.b16 %v184, %v183
  %v235 = vpack.c.b16 %v186, %v185
  %v236 = vpack.c.b16 %v188, %v187
  %v237 = vpack.c.b16 %v190, %v189
  %v238 = vpack.c.b16 %v192, %v191
  %v239 = vpack.c.b16 %v194, %v193
  %v240 = vpack.c.b16 %v196, %v195
  %v241 = vpack.c.b16 %v198, %v197
  %v242 = vpack.c.b16 %v200, %v199
  %v243 = vpack.c.b16 %v202, %v201
  %v244 = vpack.c.b16 %v204, %v203
  %v245 = vpack.c.b16 %v206, %v205
  %v246 = vpack.c.b16 %v208, %v207
  %v247 = vpack.c.b16 %v210, %v209
  %v248 = vpack.c.b16 %v212, %v211
  %v249 = vpack.c.b16 %v214, %v213
  %v250 = vpack.c.b16 %v216, %v215
  %v251 = vpack.c.b16 %v218, %v217
  %v252 = vpack.c.b16 %v220, %v219
  %285 = vmatpush.bf16.msra.mxu0 %v228
  %286 = vmatpush.bf16.msra.mxu0 %v227
  %287 = vmatpush.bf16.msra.mxu0 %v226
  %288 = vmatpush.bf16.msra.mxu0 %v225
  %289 = vmatpush.bf16.msra.mxu0 %v224
  %290 = vmatpush.bf16.msra.mxu0 %v223
  %291 = vmatpush.bf16.msra.mxu0 %v222
  %292 = vmatpush.bf16.msra.mxu0 %v221
  %293 = vmatmul.bf16.gmra.mxu0 %v85
  %v294 = vpop.f32.mrf.mxu0
  %v295 = vadd.f32 0.0, %v294
  %v296 = vpop.f32.mrf.mxu0
  %297 = vdwg.mxu0
  %298 = vmatpush.bf16.msra.mxu0 %v236
  %299 = vmatpush.bf16.msra.mxu0 %v235
  %300 = vmatpush.bf16.msra.mxu0 %v234
  %301 = vmatpush.bf16.msra.mxu0 %v233
  %302 = vmatpush.bf16.msra.mxu0 %v232
  %303 = vmatpush.bf16.msra.mxu0 %v231
  %304 = vmatpush.bf16.msra.mxu0 %v230
  %305 = vmatpush.bf16.msra.mxu0 %v229
  %306 = vmatmul.bf16.gmra.mxu0 %v86
  %v307 = vpop.f32.mrf.mxu0
  %v308 = vadd.f32 %v295, %v307
  %v309 = vpop.f32.mrf.mxu0
  %310 = vdwg.mxu0
  %311 = vmatpush.bf16.msra.mxu0 %v244
  %312 = vmatpush.bf16.msra.mxu0 %v243
  %313 = vmatpush.bf16.msra.mxu0 %v242
  %314 = vmatpush.bf16.msra.mxu0 %v241
  %315 = vmatpush.bf16.msra.mxu0 %v240
  %316 = vmatpush.bf16.msra.mxu0 %v239
  %317 = vmatpush.bf16.msra.mxu0 %v238
  %318 = vmatpush.bf16.msra.mxu0 %v237
  %319 = vmatmul.bf16.gmra.mxu0 %v87
  %v320 = vpop.f32.mrf.mxu0
  %v321 = vadd.f32 %v308, %v320
  %v322 = vpop.f32.mrf.mxu0
  %323 = vdwg.mxu0
  %324 = vmatpush.bf16.msra.mxu0 %v252
  %325 = vmatpush.bf16.msra.mxu0 %v251
  %326 = vmatpush.bf16.msra.mxu0 %v250
  %327 = vmatpush.bf16.msra.mxu0 %v249
  %328 = vmatpush.bf16.msra.mxu0 %v248
  %329 = vmatpush.bf16.msra.mxu0 %v247
  %330 = vmatpush.bf16.msra.mxu0 %v246
  %331 = vmatpush.bf16.msra.mxu0 %v245
  %332 = vmatmul.bf16.gmra.mxu0 %v88
  %v333 = vpop.f32.mrf.mxu0
  %v334 = vadd.f32 %v321, %v333
  %v335 = vpop.f32.mrf.mxu0
  %336 = vdwg.mxu0
  %v337 = vpack.c.bf16 %v334, %v334
  %338 = vst [vmem:[%s2] sm:$0xf] %v337
  %v339 = vrot.slane %v334, 4
  %v340 = vadd.f32 %v334, %v339
  %v341 = vrot.slane %v340, 2
  %v342 = vadd.f32 %v340, %v341
  %v343 = vrot.slane %v342, 1
  %v344 = vadd.f32 %v342, %v343
  %v345 = vmul.f32 %v334, %v334
  %v346 = vrot.slane %v345, 4
  %v347 = vadd.f32 %v345, %v346
  %v348 = vrot.slane %v347, 2
  %v349 = vadd.f32 %v347, %v348
  %v350 = vrot.slane %v349, 1
  %v351 = vadd.f32 %v349, %v350
  %v354 = vrot.slane %v351, 7
  %vm355 = vcmask 1040384
  %v356 = vsel %vm355, %v344, %v354
  %v358 = vlaneseq
  %vm359 = vcmp.ge.s32.totalorder %v358, 0
  %vm360 = vcmp.lt.s32.totalorder %v358, 256
  %vm361 = vmand %vm359, %vm360
  %362 = vst.msk [vmem:[%s3] sm:$0x3] %vm361, %v356
  // Predicated region
  $region10: #{encoder_forward.11} parent=0 // pred_check
    _
  $region11: #{encoder_forward.11} parent=0 // pred_check_branch
    %364 = sbr.rel (0) target = $region13
  $region12: #{encoder_forward.11} parent=0 // pred_region
    _
  $region13: #{encoder_forward.11} parent=0 // pred_fallthru
    _
  // Predicated region
  $region14: #{encoder_forward.11} parent=0 // pred_check
    _
  $region15: #{encoder_forward.11} parent=0 // pred_check_branch
    %366 = sbr.rel (0) target = $region17
  $region16: #{encoder_forward.11} parent=0 // pred_region
    _
  $region17: #{encoder_forward.11} parent=0 // pred_fallthru
    _
  // Predicated region
  $region18: #{encoder_forward.11} parent=0 // pred_check
    _
  $region19: #{encoder_forward.11} parent=0 // pred_check_branch
    %368 = sbr.rel (0) target = $region21
  $region20: #{encoder_forward.11} parent=0 // pred_region
    _
  $region21: #{encoder_forward.11} parent=0 // pred_fallthru
    _
  // Predicated region
  $region22: #{encoder_forward.11} parent=0 // pred_check
    _
  $region23: #{encoder_forward.11} parent=0 // pred_check_branch
    %370 = sbr.rel (0) target = $region25
  $region24: #{encoder_forward.11} parent=0 // pred_region
    _
  $region25: #{encoder_forward.11} parent=0 // pred_fallthru
    _

// kernel: encoder_forward.13
$region0: #{encoder_forward.13}
  #allocation0 [shape = 'u32[]', space=smem, size = 0x4, offset = 0x4, fixed_abs, tag = 'smem constant byte address 0x4 - core index']
  #allocation1 [shape = 'u32[72,128]{1,0:T(1,128)}', space=vmem, size = 0x9000, scoped, tag = 'internal scratch']
  %s0 = inlined_call_operand.vmem [shape: bf16[16,128], index: 0, kind: input, shape index: {}]
  %s1 = inlined_call_operand.vmem [shape: bf16[128,128], index: 1, kind: input, shape index: {}]
  %s2 = inlined_call_operand.vmem [shape: f32[1,128], index: 2, kind: input, shape index: {}]
  %s3 = inlined_call_operand.vmem [shape: bf16[128,128], index: 3, kind: input, shape index: {}]
  %s4 = inlined_call_operand.vmem [shape: f32[1,128], index: 4, kind: input, shape index: {}]
  %s5 = inlined_call_operand.vmem [shape: bf16[128,128], index: 5, kind: input, shape index: {}]
  %s6 = inlined_call_operand.vmem [shape: f32[1,128], index: 6, kind: input, shape index: {}]
  %s7 = inlined_call_operand.vmem [shape: f32[16,128], index: 7, kind: output, shape index: {}]
  %s8 = sld [smem:[#allocation0]]
  $region61: #{encoder_forward.13} parent=0
    _
  %s10 = ssub.s32 1, %s8
  %s11 = scalar_select 0, %s10, %s8
  loop: start=0, step=1, limit=4
  $region2: #{encoder_forward.13} parent=0 // loop_pre_header
    _
  $region3: #{encoder_forward.13} parent=0 // loop_header
    %s13 = sphi 0, %s17
    %p14 = scmp.ge.s32.totalorder %s13, 4
    %s23 = sphi 0, %s25
    %s26 = sphi 0, %s23
    %s27 = sphi 0, %s26
    %s43 = sphi 0, %s27
    %s47 = sphi 0, %s47
    %s49 = sphi 0, %s47
    %s50 = sphi 0, %s49
    %s64 = sphi 0, %s50
    %s68 = sphi 0, %s68
    %s70 = sphi 0, %s68
    %s71 = sphi 0, %s70
    %s85 = sphi 0, %s71
    %s89 = sphi 0, %s89
    %s91 = sphi 0, %s89
    %s92 = sphi 0, %s91
    %s106 = sphi 0, %s92
    %s110 = sphi 0, %s110
    %s112 = sphi 0, %s110
    %s113 = sphi 0, %s112
    %s127 = sphi 0, %s113
    %s131 = sphi 0, %s131
    %s133 = sphi 0, %s131
    %s134 = sphi 0, %s133
    %s148 = sphi 0, %s134
    %s152 = sphi 0, %s152
    %s154 = sphi 0, %s152
    %s155 = sphi 0, %s154
    %s169 = sphi 0, %s155
    %s175 = sphi 0, %s177
    %s178 = sphi 0, %s175
    %s179 = sphi 0, %s178
    %s195 = sphi 0, %s179
  $region4: #{encoder_forward.13} parent=0 // loop_header_branch
    %16 = sbr.rel (%p14) target = $region8
  $region5: #{encoder_forward.13} parent=0 // loop_body
    %s18 = ssub.s32 %s13, 1
    %s19 = ssub.s32 %s13, 2
    %s20 = sadd.s32 %s13, 1
    %s21 = ssub.s32 %s13, %s20
    %p22 = scmp.eq.s32.totalorder %s21, 0
    %s24 = sadd.s32 %s23, 1
    %s25 = scalar_select %p22, %s23, %s24
    %p28 = pneg %p22
    %p29 = scmp.eq.s32.totalorder %s13, 1
    %p30 = por %p28, %p29
    %p31 = scmp.ne.s32.totalorder %s23, %s26
    %p32 = scmp.eq.s32.totalorder %s13, 0
    %p33 = por %p31, %p32
    %p34 = scmp.ne.s32.totalorder %s23, %s26
    %p35 = scmp.eq.s32.totalorder %s18, 1
    %p36 = por %p34, %p35
    %p37 = scmp.ne.s32.totalorder %s26, %s27
    %p38 = scmp.eq.s32.totalorder %s18, 0
    %p39 = por %p37, %p38
    %p40 = scmp.ne.s32.totalorder %s26, %s27
    %p41 = scmp.eq.s32.totalorder %s19, 1
    %p42 = por %p40, %p41
    %p44 = scmp.ne.s32.totalorder %s27, %s43
    %p45 = scmp.eq.s32.totalorder %s19, 0
    %p46 = por %p44, %p45
    %s48 = sadd.s32 %s47, 1
    %p51 = scmp.eq.s32.totalorder %s13, 1
    %p52 = scmp.ne.s32.totalorder %s47, %s49
    %p53 = scmp.eq.s32.totalorder %s13, 0
    %p54 = por %p52, %p53
    %p55 = scmp.ne.s32.totalorder %s47, %s49
    %p56 = scmp.eq.s32.totalorder %s18, 1
    %p57 = por %p55, %p56
    %p58 = scmp.ne.s32.totalorder %s49, %s50
    %p59 = scmp.eq.s32.totalorder %s18, 0
    %p60 = por %p58, %p59
    %p61 = scmp.ne.s32.totalorder %s49, %s50
    %p62 = scmp.eq.s32.totalorder %s19, 1
    %p63 = por %p61, %p62
    %p65 = scmp.ne.s32.totalorder %s50, %s64
    %p66 = scmp.eq.s32.totalorder %s19, 0
    %p67 = por %p65, %p66
    %s69 = sadd.s32 %s68, 1
    %p72 = scmp.eq.s32.totalorder %s13, 1
    %p73 = scmp.ne.s32.totalorder %s68, %s70
    %p74 = scmp.eq.s32.totalorder %s13, 0
    %p75 = por %p73, %p74
    %p76 = scmp.ne.s32.totalorder %s68, %s70
    %p77 = scmp.eq.s32.totalorder %s18, 1
    %p78 = por %p76, %p77
    %p79 = scmp.ne.s32.totalorder %s70, %s71
    %p80 = scmp.eq.s32.totalorder %s18, 0
    %p81 = por %p79, %p80
    %p82 = scmp.ne.s32.totalorder %s70, %s71
    %p83 = scmp.eq.s32.totalorder %s19, 1
    %p84 = por %p82, %p83
    %p86 = scmp.ne.s32.totalorder %s71, %s85
    %p87 = scmp.eq.s32.totalorder %s19, 0
    %p88 = por %p86, %p87
    %s90 = sadd.s32 %s89, 1
    %p93 = scmp.eq.s32.totalorder %s13, 1
    %p94 = scmp.ne.s32.totalorder %s89, %s91
    %p95 = scmp.eq.s32.totalorder %s13, 0
    %p96 = por %p94, %p95
    %p97 = scmp.ne.s32.totalorder %s89, %s91
    %p98 = scmp.eq.s32.totalorder %s18, 1
    %p99 = por %p97, %p98
    %p100 = scmp.ne.s32.totalorder %s91, %s92
    %p101 = scmp.eq.s32.totalorder %s18, 0
    %p102 = por %p100, %p101
    %p103 = scmp.ne.s32.totalorder %s91, %s92
    %p104 = scmp.eq.s32.totalorder %s19, 1
    %p105 = por %p103, %p104
    %p107 = scmp.ne.s32.totalorder %s92, %s106
    %p108 = scmp.eq.s32.totalorder %s19, 0
    %p109 = por %p107, %p108
    %s111 = sadd.s32 %s110, 1
    %p114 = scmp.eq.s32.totalorder %s13, 1
    %p115 = scmp.ne.s32.totalorder %s110, %s112
    %p116 = scmp.eq.s32.totalorder %s13, 0
    %p117 = por %p115, %p116
    %p118 = scmp.ne.s32.totalorder %s110, %s112
    %p119 = scmp.eq.s32.totalorder %s18, 1
    %p120 = por %p118, %p119
    %p121 = scmp.ne.s32.totalorder %s112, %s113
    %p122 = scmp.eq.s32.totalorder %s18, 0
    %p123 = por %p121, %p122
    %p124 = scmp.ne.s32.totalorder %s112, %s113
    %p125 = scmp.eq.s32.totalorder %s19, 1
    %p126 = por %p124, %p125
    %p128 = scmp.ne.s32.totalorder %s113, %s127
    %p129 = scmp.eq.s32.totalorder %s19, 0
    %p130 = por %p128, %p129
    %s132 = sadd.s32 %s131, 1
    %p135 = scmp.eq.s32.totalorder %s13, 1
    %p136 = scmp.ne.s32.totalorder %s131, %s133
    %p137 = scmp.eq.s32.totalorder %s13, 0
    %p138 = por %p136, %p137
    %p139 = scmp.ne.s32.totalorder %s131, %s133
    %p140 = scmp.eq.s32.totalorder %s18, 1
    %p141 = por %p139, %p140
    %p142 = scmp.ne.s32.totalorder %s133, %s134
    %p143 = scmp.eq.s32.totalorder %s18, 0
    %p144 = por %p142, %p143
    %p145 = scmp.ne.s32.totalorder %s133, %s134
    %p146 = scmp.eq.s32.totalorder %s19, 1
    %p147 = por %p145, %p146
    %p149 = scmp.ne.s32.totalorder %s134, %s148
    %p150 = scmp.eq.s32.totalorder %s19, 0
    %p151 = por %p149, %p150
    %s153 = sadd.s32 %s152, 1
    %p156 = scmp.eq.s32.totalorder %s13, 1
    %p157 = scmp.ne.s32.totalorder %s152, %s154
    %p158 = scmp.eq.s32.totalorder %s13, 0
    %p159 = por %p157, %p158
    %p160 = scmp.ne.s32.totalorder %s152, %s154
    %p161 = scmp.eq.s32.totalorder %s18, 1
    %p162 = por %p160, %p161
    %p163 = scmp.ne.s32.totalorder %s154, %s155
    %p164 = scmp.eq.s32.totalorder %s18, 0
    %p165 = por %p163, %p164
    %p166 = scmp.ne.s32.totalorder %s154, %s155
    %p167 = scmp.eq.s32.totalorder %s19, 1
    %p168 = por %p166, %p167
    %p170 = scmp.ne.s32.totalorder %s155, %s169
    %p171 = scmp.eq.s32.totalorder %s19, 0
    %p172 = por %p170, %p171
    %s173 = ssub.s32 %s13, %s20
    %p174 = scmp.eq.s32.totalorder %s173, 0
    %s176 = sadd.s32 %s175, 1
    %s177 = scalar_select %p174, %s175, %s176
    %p180 = pneg %p174
    %p181 = scmp.eq.s32.totalorder %s13, 1
    %p182 = por %p180, %p181
    %p183 = scmp.ne.s32.totalorder %s175, %s178
    %p184 = scmp.eq.s32.totalorder %s13, 0
    %p185 = por %p183, %p184
    %p186 = scmp.ne.s32.totalorder %s175, %s178
    %p187 = scmp.eq.s32.totalorder %s18, 1
    %p188 = por %p186, %p187
    %p189 = scmp.ne.s32.totalorder %s178, %s179
    %p190 = scmp.eq.s32.totalorder %s18, 0
    %p191 = por %p189, %p190
    %p192 = scmp.ne.s32.totalorder %s178, %s179
    %p193 = scmp.eq.s32.totalorder %s19, 1
    %p194 = por %p192, %p193
    %p196 = scmp.ne.s32.totalorder %s179, %s195
    %p197 = scmp.eq.s32.totalorder %s19, 0
    %p198 = por %p196, %p197
    %p199 = scmp.le.s32.totalorder 1, %s13
    %p200 = scmp.lt.s32.totalorder %s13, 3
    %p201 = pnand %p199, %p200
    %p202 = pneg %p201
    // Predicated region
    $region9: #{encoder_forward.13} parent=5 // pred_check
      _
    $region10: #{encoder_forward.13} parent=5 // pred_check_branch
      %204 = sbr.rel (%p201) target = $region12
    $region11: #{encoder_forward.13} parent=5 // pred_region
      %s205 = ssub.s32 %s13, 1
      // Predicated region
      $region13: #{encoder_forward.13} parent=11 // pred_check
        %p206 = pneg %p60
      $region14: #{encoder_forward.13} parent=11 // pred_check_branch
        %208 = sbr.rel (%p206) target = $region16
      $region15: #{encoder_forward.13} parent=11 // pred_region
        _
      $region16: #{encoder_forward.13} parent=11 // pred_fallthru
        _
      // Predicated region
      $region17: #{encoder_forward.13} parent=11 // pred_check
        %p209 = pneg %p81
      $region18: #{encoder_forward.13} parent=11 // pred_check_branch
        %211 = sbr.rel (%p209) target = $region20
      $region19: #{encoder_forward.13} parent=11 // pred_region
        _
      $region20: #{encoder_forward.13} parent=11 // pred_fallthru
        _
      // Predicated region
      $region21: #{encoder_forward.13} parent=11 // pred_check
        %p212 = pneg %p102
      $region22: #{encoder_forward.13} parent=11 // pred_check_branch
        %214 = sbr.rel (%p212) target = $region24
      $region23: #{encoder_forward.13} parent=11 // pred_region
        _
      $region24: #{encoder_forward.13} parent=11 // pred_fallthru
        _
      // Predicated region
      $region25: #{encoder_forward.13} parent=11 // pred_check
        %p215 = pneg %p123
      $region26: #{encoder_forward.13} parent=11 // pred_check_branch
        %217 = sbr.rel (%p215) target = $region28
      $region27: #{encoder_forward.13} parent=11 // pred_region
        _
      $region28: #{encoder_forward.13} parent=11 // pred_fallthru
        _
      // Predicated region
      $region29: #{encoder_forward.13} parent=11 // pred_check
        %p218 = pneg %p144
      $region30: #{encoder_forward.13} parent=11 // pred_check_branch
        %220 = sbr.rel (%p218) target = $region32
      $region31: #{encoder_forward.13} parent=11 // pred_region
        _
      $region32: #{encoder_forward.13} parent=11 // pred_fallthru
        _
      // Predicated region
      $region33: #{encoder_forward.13} parent=11 // pred_check
        %p221 = pneg %p165
      $region34: #{encoder_forward.13} parent=11 // pred_check_branch
        %223 = sbr.rel (%p221) target = $region36
      $region35: #{encoder_forward.13} parent=11 // pred_region
        _
      $region36: #{encoder_forward.13} parent=11 // pred_fallthru
        _
    $region12: #{encoder_forward.13} parent=5 // pred_fallthru
      _
    %p224 = scmp.lt.s32.totalorder %s13, 2
    // Predicated region
    $region37: #{encoder_forward.13} parent=5 // pred_check
      %p225 = pneg %p224
    $region38: #{encoder_forward.13} parent=5 // pred_check_branch
      %227 = sbr.rel (%p225) target = $region40
    $region39: #{encoder_forward.13} parent=5 // pred_region
      // Predicated region
      $region41: #{encoder_forward.13} parent=39 // pred_check
        %p228 = pneg %p33
      $region42: #{encoder_forward.13} parent=39 // pred_check_branch
        %230 = sbr.rel (%p228) target = $region44
      $region43: #{encoder_forward.13} parent=39 // pred_region
        %p231 = scmp.lt.s32.totalorder %s13, 1
        %s232 = scalar_select %p231, %s13, 1
        %s233 = smul.addr %s232, 4
        %s234 = scalar_lea.vmem %s0, %s233
      $region44: #{encoder_forward.13} parent=39 // pred_fallthru
        _
    $region40: #{encoder_forward.13} parent=5 // pred_fallthru
      _
    %p235 = scmp.le.s32.totalorder 1, %s13
    %p236 = scmp.lt.s32.totalorder %s13, 3
    %p237 = pnand %p235, %p236
    %p238 = pneg %p237
    // Predicated region
    $region45: #{encoder_forward.13} parent=5 // pred_check
      _
    $region46: #{encoder_forward.13} parent=5 // pred_check_branch
      %240 = sbr.rel (%p237) target = $region48
    $region47: #{encoder_forward.13} parent=5 // pred_region
      %s241 = ssub.s32 %s13, 1
      %p242 = scmp.lt.s32.totalorder %s18, 1
      %s243 = scalar_select %p242, %s18, 1
      %s244 = smul.addr %s243, 4
      %s245 = scalar_lea.vmem %s0, %s244
      %p246 = pneg %p39
      %p247 = pneg %p36
      %p248 = pneg %p60
      %p249 = pneg %p57
      %p250 = pneg %p81
      %p251 = pneg %p78
      %p252 = pneg %p102
      %p253 = pneg %p99
      %p254 = pneg %p123
      %p255 = pneg %p120
      %p256 = pneg %p144
      %p257 = pneg %p141
      %p258 = pneg %p165
      %p259 = pneg %p162
      %p260 = pneg %p191
      %p261 = pneg %p188
      %p262 = scmp.lt.s32.totalorder %s18, 1
      %s263 = scalar_select %p262, %s18, 1
      %s264 = smul.addr %s263, 8
      %s265 = scalar_lea.vmem %s7, %s264
      %p266 = scmp.lt.s32.totalorder %s18, 1
      %s267 = scalar_select %p266, %s18, 1
      %s268 = smul.addr %s267, 4
      %s269 = scalar_lea.vmem %s0, %s268
      %p270 = scmp.lt.s32.totalorder %s18, 1
      %s271 = scalar_select %p270, %s18, 1
      %s272 = smul.addr %s271, 8
      %s273 = scalar_lea.vmem %s7, %s272
      %v274 = vld [vmem:[%s269] sm:$0xf]
      %v275 = vld [vmem:[%s1] sm:$0xf]
      %v276 = vld [vmem:[%s1 + $0x4] sm:$0xf]
      %v277 = vld [vmem:[%s1 + $0x8] sm:$0xf]
      %v278 = vld [vmem:[%s1 + $0xc] sm:$0xf]
      %v279 = vld [vmem:[%s1 + $0x10] sm:$0xf]
      %v280 = vld [vmem:[%s1 + $0x14] sm:$0xf]
      %v281 = vld [vmem:[%s1 + $0x18] sm:$0xf]
      %v282 = vld [vmem:[%s1 + $0x1c] sm:$0xf]
      %v283 = vld [vmem:[%s1 + $0x20] sm:$0xf]
      %v284 = vld [vmem:[%s1 + $0x24] sm:$0xf]
      %v285 = vld [vmem:[%s1 + $0x28] sm:$0xf]
      %v286 = vld [vmem:[%s1 + $0x2c] sm:$0xf]
      %v287 = vld [vmem:[%s1 + $0x30] sm:$0xf]
      %v288 = vld [vmem:[%s1 + $0x34] sm:$0xf]
      %v289 = vld [vmem:[%s1 + $0x38] sm:$0xf]
      %v290 = vld [vmem:[%s1 + $0x3c] sm:$0xf]
      %v291 = vld [vmem:[%s2] sm:$0x1]
      %v293 = vperm.slane %v291, 0
      %v311 = vunpack.c.l.b16 %v275
      %v312 = vunpack.c.l.b16 %v276
      %v313 = vunpack.c.l.b16 %v277
      %v314 = vunpack.c.l.b16 %v278
      %v315 = vunpack.c.l.b16 %v279
      %v316 = vunpack.c.l.b16 %v280
      %v317 = vunpack.c.l.b16 %v281
      %v318 = vunpack.c.l.b16 %v282
      %v319 = vunpack.c.l.b16 %v283
      %v320 = vunpack.c.l.b16 %v284
      %v321 = vunpack.c.l.b16 %v285
      %v322 = vunpack.c.l.b16 %v286
      %v323 = vunpack.c.l.b16 %v287
      %v324 = vunpack.c.l.b16 %v288
      %v325 = vunpack.c.l.b16 %v289
      %v326 = vunpack.c.l.b16 %v290
      %v327 = vpack.c.b16 %v312, %v311
      %v328 = vpack.c.b16 %v314, %v313
      %v329 = vpack.c.b16 %v316, %v315
      %v330 = vpack.c.b16 %v318, %v317
      %v331 = vpack.c.b16 %v320, %v319
      %v332 = vpack.c.b16 %v322, %v321
      %v333 = vpack.c.b16 %v324, %v323
      %v334 = vpack.c.b16 %v326, %v325
      %343 = vmatpush.bf16.msra.mxu0 %v334
      %344 = vmatpush.bf16.msra.mxu0 %v333
      %345 = vmatpush.bf16.msra.mxu0 %v332
      %346 = vmatpush.bf16.msra.mxu0 %v331
      %347 = vmatpush.bf16.msra.mxu0 %v330
      %348 = vmatpush.bf16.msra.mxu0 %v329
      %349 = vmatpush.bf16.msra.mxu0 %v328
      %350 = vmatpush.bf16.msra.mxu0 %v327
      %351 = vmatmul.bf16.gmra.mxu0 %v274
      %v352 = vpop.f32.mrf.mxu0
      %v353 = vadd.f32 %v293, %v352
      %v354 = vpop.f32.mrf.mxu0
      %355 = vdwg.mxu0
      %v356 = vmax.f32 %v353, 0.0
      %v357 = vpack.c.bf16 %v356, %v356
      %v358 = vld [vmem:[%s3] sm:$0xf]
      %v359 = vld [vmem:[%s3 + $0x4] sm:$0xf]
      %v360 = vld [vmem:[%s3 + $0x8] sm:$0xf]
      %v361 = vld [vmem:[%s3 + $0xc] sm:$0xf]
      %v362 = vld [vmem:[%s3 + $0x10] sm:$0xf]
      %v363 = vld [vmem:[%s3 + $0x14] sm:$0xf]
      %v364 = vld [vmem:[%s3 + $0x18] sm:$0xf]
      %v365 = vld [vmem:[%s3 + $0x1c] sm:$0xf]
      %v366 = vld [vmem:[%s3 + $0x20] sm:$0xf]
      %v367 = vld [vmem:[%s3 + $0x24] sm:$0xf]
      %v368 = vld [vmem:[%s3 + $0x28] sm:$0xf]
      %v369 = vld [vmem:[%s3 + $0x2c] sm:$0xf]
      %v370 = vld [vmem:[%s3 + $0x30] sm:$0xf]
      %v371 = vld [vmem:[%s3 + $0x34] sm:$0xf]
      %v372 = vld [vmem:[%s3 + $0x38] sm:$0xf]
      %v373 = vld [vmem:[%s3 + $0x3c] sm:$0xf]
      %v374 = vld [vmem:[%s4] sm:$0x1]
      %v376 = vperm.slane %v374, 0
      %v394 = vunpack.c.l.b16 %v358
      %v395 = vunpack.c.l.b16 %v359
      %v396 = vunpack.c.l.b16 %v360
      %v397 = vunpack.c.l.b16 %v361
      %v398 = vunpack.c.l.b16 %v362
      %v399 = vunpack.c.l.b16 %v363
      %v400 = vunpack.c.l.b16 %v364
      %v401 = vunpack.c.l.b16 %v365
      %v402 = vunpack.c.l.b16 %v366
      %v403 = vunpack.c.l.b16 %v367
      %v404 = vunpack.c.l.b16 %v368
      %v405 = vunpack.c.l.b16 %v369
      %v406 = vunpack.c.l.b16 %v370
      %v407 = vunpack.c.l.b16 %v371
      %v408 = vunpack.c.l.b16 %v372
      %v409 = vunpack.c.l.b16 %v373
      %v410 = vpack.c.b16 %v395, %v394
      %v411 = vpack.c.b16 %v397, %v396
      %v412 = vpack.c.b16 %v399, %v398
      %v413 = vpack.c.b16 %v401, %v400
      %v414 = vpack.c.b16 %v403, %v402
      %v415 = vpack.c.b16 %v405, %v404
      %v416 = vpack.c.b16 %v407, %v406
      %v417 = vpack.c.b16 %v409, %v408
      %426 = vmatpush.bf16.msra.mxu0 %v417
      %427 = vmatpush.bf16.msra.mxu0 %v416
      %428 = vmatpush.bf16.msra.mxu0 %v415
      %429 = vmatpush.bf16.msra.mxu0 %v414
      %430 = vmatpush.bf16.msra.mxu0 %v413
      %431 = vmatpush.bf16.msra.mxu0 %v412
      %432 = vmatpush.bf16.msra.mxu0 %v411
      %433 = vmatpush.bf16.msra.mxu0 %v410
      %434 = vmatmul.bf16.gmra.mxu0 %v357
      %v435 = vpop.f32.mrf.mxu0
      %v436 = vadd.f32 %v376, %v435
      %v437 = vpop.f32.mrf.mxu0
      %438 = vdwg.mxu0
      %v439 = vmax.f32 %v436, 0.0
      %v440 = vpack.c.bf16 %v439, %v439
      %v441 = vld [vmem:[%s5] sm:$0xf]
      %v442 = vld [vmem:[%s5 + $0x4] sm:$0xf]
      %v443 = vld [vmem:[%s5 + $0x8] sm:$0xf]
      %v444 = vld [vmem:[%s5 + $0xc] sm:$0xf]
      %v445 = vld [vmem:[%s5 + $0x10] sm:$0xf]
      %v446 = vld [vmem:[%s5 + $0x14] sm:$0xf]
      %v447 = vld [vmem:[%s5 + $0x18] sm:$0xf]
      %v448 = vld [vmem:[%s5 + $0x1c] sm:$0xf]
      %v449 = vld [vmem:[%s5 + $0x20] sm:$0xf]
      %v450 = vld [vmem:[%s5 + $0x24] sm:$0xf]
      %v451 = vld [vmem:[%s5 + $0x28] sm:$0xf]
      %v452 = vld [vmem:[%s5 + $0x2c] sm:$0xf]
      %v453 = vld [vmem:[%s5 + $0x30] sm:$0xf]
      %v454 = vld [vmem:[%s5 + $0x34] sm:$0xf]
      %v455 = vld [vmem:[%s5 + $0x38] sm:$0xf]
      %v456 = vld [vmem:[%s5 + $0x3c] sm:$0xf]
      %v457 = vld [vmem:[%s6] sm:$0x1]
      %v459 = vperm.slane %v457, 0
      %v477 = vunpack.c.l.b16 %v441
      %v478 = vunpack.c.l.b16 %v442
      %v479 = vunpack.c.l.b16 %v443
      %v480 = vunpack.c.l.b16 %v444
      %v481 = vunpack.c.l.b16 %v445
      %v482 = vunpack.c.l.b16 %v446
      %v483 = vunpack.c.l.b16 %v447
      %v484 = vunpack.c.l.b16 %v448
      %v485 = vunpack.c.l.b16 %v449
      %v486 = vunpack.c.l.b16 %v450
      %v487 = vunpack.c.l.b16 %v451
      %v488 = vunpack.c.l.b16 %v452
      %v489 = vunpack.c.l.b16 %v453
      %v490 = vunpack.c.l.b16 %v454
      %v491 = vunpack.c.l.b16 %v455
      %v492 = vunpack.c.l.b16 %v456
      %v493 = vpack.c.b16 %v478, %v477
      %v494 = vpack.c.b16 %v480, %v479
      %v495 = vpack.c.b16 %v482, %v481
      %v496 = vpack.c.b16 %v484, %v483
      %v497 = vpack.c.b16 %v486, %v485
      %v498 = vpack.c.b16 %v488, %v487
      %v499 = vpack.c.b16 %v490, %v489
      %v500 = vpack.c.b16 %v492, %v491
      %509 = vmatpush.bf16.msra.mxu0 %v500
      %510 = vmatpush.bf16.msra.mxu0 %v499
      %511 = vmatpush.bf16.msra.mxu0 %v498
      %512 = vmatpush.bf16.msra.mxu0 %v497
      %513 = vmatpush.bf16.msra.mxu0 %v496
      %514 = vmatpush.bf16.msra.mxu0 %v495
      %515 = vmatpush.bf16.msra.mxu0 %v494
      %516 = vmatpush.bf16.msra.mxu0 %v493
      %517 = vmatmul.bf16.gmra.mxu0 %v440
      %v518 = vpop.f32.mrf.mxu0
      %v519 = vadd.f32 %v459, %v518
      %v520 = vpop.f32.mrf.mxu0
      %521 = vdwg.mxu0
      %v522 = vmax.f32 %v519, 0.0
      %523 = vst [vmem:[%s273] sm:$0xff] %v522
      %p524 = scmp.lt.s32.totalorder %s18, 1
      %s525 = scalar_select %p524, %s18, 1
      %s526 = smul.addr %s525, 8
      %s527 = scalar_lea.vmem %s7, %s526
      // Predicated region
      $region49: #{encoder_forward.13} parent=47 // pred_check
        %p528 = pneg %p188
      $region50: #{encoder_forward.13} parent=47 // pred_check_branch
        %530 = sbr.rel (%p528) target = $region52
      $region51: #{encoder_forward.13} parent=47 // pred_region
        _
      $region52: #{encoder_forward.13} parent=47 // pred_fallthru
        _
    $region48: #{encoder_forward.13} parent=5 // pred_fallthru
      _
    %p531 = scmp.le.s32.totalorder 2, %s13
    // Predicated region
    $region53: #{encoder_forward.13} parent=5 // pred_check
      %p532 = pneg %p531
    $region54: #{encoder_forward.13} parent=5 // pred_check_branch
      %534 = sbr.rel (%p532) target = $region56
    $region55: #{encoder_forward.13} parent=5 // pred_region
      %s535 = ssub.s32 %s13, 2
      // Predicated region
      $region57: #{encoder_forward.13} parent=55 // pred_check
        %p536 = pneg %p194
      $region58: #{encoder_forward.13} parent=55 // pred_check_branch
        %538 = sbr.rel (%p536) target = $region60
      $region59: #{encoder_forward.13} parent=55 // pred_region
        %p539 = scmp.lt.s32.totalorder %s19, 1
        %s540 = scalar_select %p539, %s19, 1
        %s541 = smul.addr %s540, 8
        %s542 = scalar_lea.vmem %s7, %s541
      $region60: #{encoder_forward.13} parent=55 // pred_fallthru
        _
    $region56: #{encoder_forward.13} parent=5 // pred_fallthru
      _
  $region6: #{encoder_forward.13} parent=0 // loop_footer
    %s17 = sadd.s32 1, %s13
  $region7: #{encoder_forward.13} parent=0 // loop_footer_branch
    %12 = sbr.rel target = $region3
  $region8: #{encoder_forward.13} parent=0 // loop_exit
    _

</llo_original>
